<compile_context>
chip_gen: v7x
topology: tpu7x:2x2x1
jax: 0.10.0
libtpu: 0.0.40
codegen_flags: <defaults>
</compile_context>

<pallas_src>
import functools
import math

import jax
import jax.numpy as jnp
from jax import lax
from jax.experimental import pallas as pl
from jax.experimental.pallas import tpu as pltpu


# ----------------------------------------------------------------------------
# in-kernel attention core (scores -> softmax -> PV), operating on already
# projected fused-QKV rows.  qkv_* layout: [:, 0:E]=Q (pre-scaled), [E:2E]=K,
# [2E:3E]=V.
# ----------------------------------------------------------------------------
def _attend(qkv_q, qkv_kv, e, num_heads, need_weights, exact_softmax):
    lq = qkv_q.shape[0]
    lk = qkv_kv.shape[0]
    dh = e // num_heads

    attn_sum = jnp.zeros((lq, lk), jnp.float32)
    head_outs = []
    for h in range(num_heads):                      # static unroll (H is tiny)
        qh = qkv_q[:, h * dh:(h + 1) * dh]          # 1/sqrt(dh) pre-folded into Wq/bq
        kh = qkv_kv[:, e + h * dh:e + (h + 1) * dh]
        vh = qkv_kv[:, 2 * e + h * dh:2 * e + (h + 1) * dh]
        # scores = qh @ kh^T  (contract last dims -> no explicit transpose)
        s = lax.dot_general(qh, kh, (((1,), (1,)), ((), ())),
                            preferred_element_type=jnp.float32)
        s = s - jnp.max(s, axis=-1, keepdims=True)          # stable softmax
        p = jnp.exp(s)
        denom = jnp.sum(p, axis=-1, keepdims=True)
        if exact_softmax:
            p = p / denom
        else:
            p = p * pl.reciprocal(denom, approx=True)       # EUP slot, off the VALU
        if need_weights:
            attn_sum = attn_sum + p
        head_outs.append(jnp.dot(p, vh, preferred_element_type=jnp.float32))

    out = head_outs[0] if num_heads == 1 else jnp.concatenate(head_outs, axis=-1)
    attn_w = attn_sum * (1.0 / num_heads) if need_weights else None
    return out, attn_w


# ----------------------------------------------------------------------------
# the fused kernel: whole StandardAttentionModule forward in one invocation
# ----------------------------------------------------------------------------
def _standard_attention_kernel(tgt_ref, ref_ref,
                               wqkv_ref, bqkv_ref, wo_ref, bo_ref,
                               out_ref, *, num_heads, need_weights, exact_softmax):
    tt, e = tgt_ref.shape
    tr = ref_ref.shape[0]

    target = tgt_ref[...]                                    # (Tt, E)
    ref = ref_ref[...]                                       # (Tr, E)
    # torch.linalg.norm(target, dim=1) over the size-1 batch axis == |target|
    # TODO(synk): for N > 1 this must become a real cross-batch L2 reduce.
    tgt_norm = jnp.abs(target)                               # (Tt, E)

    # ---- stage 1: ONE fused QKV matmul for ta (cross) and sa (self) --------
    x1 = jnp.concatenate([target, ref, tgt_norm], axis=0)    # (2Tt+Tr, E)
    y1 = jnp.dot(x1, wqkv_ref[0],
                 preferred_element_type=jnp.float32) + bqkv_ref[0]   # (2Tt+Tr, 6E)
    qkv_q_ta = y1[0:tt, 0:3 * e]                              # target  @ W_ta
    qkv_kv_ta = y1[tt:tt + tr, 0:3 * e]                       # ref     @ W_ta
    qkv_sa = y1[tt + tr:tt + tr + tt, 3 * e:6 * e]            # |target|@ W_sa

    attn_ta, ta_w = _attend(qkv_q_ta, qkv_kv_ta, e, num_heads,
                            need_weights, exact_softmax)
    attn_sa, sa_w = _attend(qkv_sa, qkv_sa, e, num_heads,
                            need_weights, exact_softmax)

    # block-diagonal out-projection -> lane-packed [context | refined]
    stage1 = jnp.dot(jnp.concatenate([attn_ta, attn_sa], axis=-1), wo_ref[0],
                     preferred_element_type=jnp.float32) + bo_ref[0]  # (Tt, 2E)
    context = stage1[:, 0:e]
    refined = stage1[:, e:2 * e]

    # ---- stage 2: ONE fused QKV matmul for both cross-attentions -----------
    # context / refined never leave VMEM.
    x2 = jnp.concatenate([context, refined], axis=0)          # (2Tt, E)
    y2 = jnp.dot(x2, wqkv_ref[1],
                 preferred_element_type=jnp.float32) + bqkv_ref[1]    # (2Tt, 6E)
    qkv_ctx_sf = y2[0:tt, 0:3 * e]                             # context @ W_sf
    qkv_ref_sf = y2[tt:2 * tt, 0:3 * e]                        # refined @ W_sf
    qkv_ctx_tf = y2[0:tt, 3 * e:6 * e]                         # context @ W_tf
    qkv_ref_tf = y2[tt:2 * tt, 3 * e:6 * e]                    # refined @ W_tf

    attn_sf, sf_w = _attend(qkv_ctx_sf, qkv_ref_sf, e, num_heads,
                            need_weights, exact_softmax)
    attn_tf, tf_w = _attend(qkv_ref_tf, qkv_ctx_tf, e, num_heads,
                            need_weights, exact_softmax)

    # block-diagonal out-projection -> lane-packed [spatialfused | temporalfused]
    stage2 = jnp.dot(jnp.concatenate([attn_sf, attn_tf], axis=-1), wo_ref[1],
                     preferred_element_type=jnp.float32) + bo_ref[1]  # (Tt, 2E)

    # ---- single lane-dense output slab (padded to a multiple of 128) -------
    pieces = [stage1, stage2]
    if need_weights:
        pieces += [ta_w, sa_w, sf_w, tf_w]
    used = sum(p.shape[-1] for p in pieces)
    pad = out_ref.shape[-1] - used
    if pad:
        pieces.append(jnp.zeros((tt, pad), jnp.float32))
    out_ref[...] = jnp.concatenate(pieces, axis=-1)


# ----------------------------------------------------------------------------
# parameter construction (torch nn.MultiheadAttention-shaped) and offline
# packing into the 4 stacked kernel refs
# ----------------------------------------------------------------------------
def init_mha_params(key, embed_dim):
    """Deterministic init matching nn.MultiheadAttention parameter shapes."""
    k_in, k_out, k_bias = jax.random.split(key, 3)
    bound = 1.0 / math.sqrt(embed_dim)
    return dict(
        in_proj_weight=jax.random.uniform(k_in, (3 * embed_dim, embed_dim),
                                          jnp.float32, -bound, bound),
        in_proj_bias=jax.random.uniform(k_bias, (3 * embed_dim,),
                                        jnp.float32, -bound, bound),
        out_proj_weight=jax.random.uniform(k_out, (embed_dim, embed_dim),
                                           jnp.float32, -bound, bound),
        out_proj_bias=jnp.zeros((embed_dim,), jnp.float32),
    )


def pack_kernel_params(params, embed_dim, num_heads):
    """Build the 4 stacked / fused / pre-scaled weight refs (done once, offline)."""
    e = embed_dim
    assert e % num_heads == 0
    scale = 1.0 / math.sqrt(e // num_heads)

    def fused_qkv(p):
        wq, wk, wv = jnp.split(p["in_proj_weight"], 3, axis=0)     # each (E, E)
        bq, bk, bv = jnp.split(p["in_proj_bias"], 3)
        w = jnp.concatenate([wq.T * scale, wk.T, wv.T], axis=1)    # (E, 3E)
        b = jnp.concatenate([bq * scale, bk, bv])                  # (3E,)
        return w, b

    def blockdiag(a, b):
        z = jnp.zeros_like(a)
        return jnp.concatenate(
            [jnp.concatenate([a, z], axis=1),
             jnp.concatenate([z, b], axis=1)], axis=0)             # (2E, 2E)

    w_ta, b_ta = fused_qkv(params["ta"])
    w_sa, b_sa = fused_qkv(params["sa"])
    w_sf, b_sf = fused_qkv(params["ta_to_sa"])
    w_tf, b_tf = fused_qkv(params["sa_to_ta"])

    wqkv_stack = jnp.stack([jnp.concatenate([w_ta, w_sa], axis=1),
                            jnp.concatenate([w_sf, w_tf], axis=1)])      # (2, E, 6E)
    bqkv_stack = jnp.stack([jnp.concatenate([b_ta, b_sa]),
                            jnp.concatenate([b_sf, b_tf])])[:, None, :]  # (2, 1, 6E)

    wo_stack = jnp.stack(
        [blockdiag(params["ta"]["out_proj_weight"].T,
                   params["sa"]["out_proj_weight"].T),
         blockdiag(params["ta_to_sa"]["out_proj_weight"].T,
                   params["sa_to_ta"]["out_proj_weight"].T)])            # (2, 2E, 2E)
    bo_stack = jnp.stack(
        [jnp.concatenate([params["ta"]["out_proj_bias"],
                          params["sa"]["out_proj_bias"]]),
         jnp.concatenate([params["ta_to_sa"]["out_proj_bias"],
                          params["sa_to_ta"]["out_proj_bias"]])])[:, None, :]  # (2,1,2E)

    return wqkv_stack, bqkv_stack, wo_stack, bo_stack


# ----------------------------------------------------------------------------
# wrapper
# ----------------------------------------------------------------------------
def standard_attention_forward(ref, target, kparams, num_heads,
                               need_weights=True, exact_softmax=False):
    """JAX/Pallas equivalent of StandardAttentionModule.forward.

    ref:    (Tr, 1, E)   torch MHA layout (L, N, E), N == 1
    target: (Tt, 1, E)
    """
    tt, n, e = target.shape
    tr = ref.shape[0]
    assert n == 1 and ref.shape[1] == 1, "module assumes batch size N == 1"
    assert e % num_heads == 0, "embed_dim must be divisible by num_heads"

    tgt2 = target[:, 0, :]                                    # (Tt, E)
    ref2 = ref[:, 0, :]                                       # (Tr, E)
    wqkv, bqkv, wo, bo = kparams

    width = 4 * e + (tr + 3 * tt if need_weights else 0)
    padded = ((width + 127) // 128) * 128                     # lane-dense slab

    vmem = pl.BlockSpec(memory_space=pltpu.MemorySpace.VMEM)
    kernel = functools.partial(_standard_attention_kernel,
                               num_heads=num_heads,
                               need_weights=need_weights,
                               exact_softmax=exact_softmax)
    out = pl.pallas_call(
        kernel,
        out_shape=jax.ShapeDtypeStruct((tt, padded), jnp.float32),
        in_specs=[vmem] * 6,
        out_specs=vmem,
    )(tgt2, ref2, wqkv, bqkv, wo, bo)

    # plain-JAX glue: unpack the lane-packed slab
    context = out[:, 0 * e:1 * e]
    refined = out[:, 1 * e:2 * e]
    spatialfused = out[:, 2 * e:3 * e]
    temporalfused = out[:, 3 * e:4 * e]
    feats = [context, refined, spatialfused, temporalfused]
    if not need_weights:
        return feats, None

    o = 4 * e
    # torch returns (N=1, Lq, Lk) weights for the batched `ta` call and
    # unbatched (Lq, Lk) weights for the subsequent unbatched calls.
    ta_w = out[:, o:o + tr][None]
    sa_w = out[:, o + tr:o + tr + tt]
    sf_w = out[:, o + tr + tt:o + tr + 2 * tt]
    tf_w = out[:, o + tr + 2 * tt:o + tr + 3 * tt]
    return feats, [ta_w, sa_w, sf_w, tf_w]


# ----------------------------------------------------------------------------
# pure-JAX reference (mirrors torch semantics) for a correctness check
# ----------------------------------------------------------------------------
def _ref_mha(x_q, x_kv, p, num_heads):
    e = x_q.shape[-1]
    dh = e // num_heads
    hp = lax.Precision.HIGHEST
    wq, wk, wv = jnp.split(p["in_proj_weight"], 3, axis=0)
    bq, bk, bv = jnp.split(p["in_proj_bias"], 3)
    q = jnp.dot(x_q, wq.T, precision=hp) + bq
    k = jnp.dot(x_kv, wk.T, precision=hp) + bk
    v = jnp.dot(x_kv, wv.T, precision=hp) + bv
    lq, lk = q.shape[0], k.shape[0]
    q = q.reshape(lq, num_heads, dh).transpose(1, 0, 2)
    k = k.reshape(lk, num_heads, dh).transpose(1, 0, 2)
    v = v.reshape(lk, num_heads, dh).transpose(1, 0, 2)
    s = jnp.einsum("hqd,hkd->hqk", q, k, precision=hp) / math.sqrt(dh)
    pw = jax.nn.softmax(s, axis=-1)
    ctx = jnp.einsum("hqk,hkd->hqd", pw, v, precision=hp)
    ctx = ctx.transpose(1, 0, 2).reshape(lq, e)
    out = jnp.dot(ctx, p["out_proj_weight"].T, precision=hp) + p["out_proj_bias"]
    return out, pw.mean(axis=0)


def _reference_forward(ref, target, params, num_heads):
    tgt2, ref2 = target[:, 0, :], ref[:, 0, :]
    context, ta_w = _ref_mha(tgt2, ref2, params["ta"], num_heads)
    tgt_norm = jnp.abs(tgt2)
    refined, sa_w = _ref_mha(tgt_norm, tgt_norm, params["sa"], num_heads)
    sf, sf_w = _ref_mha(context, refined, params["ta_to_sa"], num_heads)
    tf, tf_w = _ref_mha(refined, context, params["sa_to_ta"], num_heads)
    return [context, refined, sf, tf], [ta_w[None], sa_w, sf_w, tf_w]


if __name__ == "__main__":
    E = 32          # embed dim
    H = 2           # heads
    Tt, Tr, N = 8, 16, 1

    key = jax.random.PRNGKey(0)
    k_tgt, k_ref, k_par = jax.random.split(key, 3)
    target = jax.random.normal(k_tgt, (Tt, N, E), jnp.float32)
    ref = jax.random.normal(k_ref, (Tr, N, E), jnp.float32)

    pkeys = jax.random.split(k_par, 4)
    raw_params = {name: init_mha_params(pkeys[i], E)
                  for i, name in enumerate(["ta", "sa", "ta_to_sa", "sa_to_ta"])}
    kparams = pack_kernel_params(raw_params, E, H)

    feats, weights = standard_attention_forward(ref, target, kparams, H)
    jax.block_until_ready((feats, weights))

    # shape / finiteness checks
    assert all(o.shape == (Tt, E) for o in feats)
    assert weights[0].shape == (1, Tt, Tr)
    assert weights[1].shape == (Tt, Tt)
    assert weights[2].shape == (Tt, Tt) and weights[3].shape == (Tt, Tt)
    assert all(bool(jnp.all(jnp.isfinite(o))) for o in feats)
    assert all(bool(jnp.all(jnp.isfinite(w))) for w in weights)

    # numerical check against the pure-JAX (torch-semantics) reference
    feats_ref, weights_ref = _reference_forward(ref, target, raw_params, H)
    for a, b in zip(feats, feats_ref):
        assert bool(jnp.allclose(a, b, atol=1e-2, rtol=1e-2))
    for a, b in zip(weights, weights_ref):
        assert bool(jnp.allclose(a, b, atol=1e-2, rtol=1e-2))

    print("KERNEL_OK")
</pallas_src>

<mosaic_0001>
module attributes {stable_mosaic.version = 11 : i64} {
  func.func @_standard_attention_kernel(%arg0: memref<8x32xf32, #tpu.memory_space<vmem>>, %arg1: memref<16x32xf32, #tpu.memory_space<vmem>>, %arg2: memref<2x32x192xf32, #tpu.memory_space<vmem>>, %arg3: memref<2x1x192xf32, #tpu.memory_space<vmem>>, %arg4: memref<2x64x64xf32, #tpu.memory_space<vmem>>, %arg5: memref<2x1x64xf32, #tpu.memory_space<vmem>>, %arg6: memref<8x256xf32, #tpu.memory_space<vmem>>) attributes {dimension_semantics = [], scalar_prefetch = 0 : i64, scratch_operands = 0 : i64, tpu.core_type = #tpu.core_type<tc>} {
    %c0 = arith.constant 0 : index
    %c0_0 = arith.constant 0 : index
    %0 = vector.load %arg0[%c0, %c0_0] : memref<8x32xf32, #tpu.memory_space<vmem>>, vector<8x32xf32>
    %c0_1 = arith.constant 0 : index
    %c0_2 = arith.constant 0 : index
    %1 = vector.load %arg1[%c0_1, %c0_2] : memref<16x32xf32, #tpu.memory_space<vmem>>, vector<16x32xf32>
    %2 = math.absf %0 : vector<8x32xf32>
    %3 = tpu.concatenate %0, %1, %2 in 0 : vector<8x32xf32>, vector<16x32xf32>, vector<8x32xf32> -> vector<32x32xf32>
    %c0_3 = arith.constant 0 : index
    %c0_4 = arith.constant 0 : index
    %c0_5 = arith.constant 0 : index
    %4 = vector.load %arg2[%c0_3, %c0_4, %c0_5] : memref<2x32x192xf32, #tpu.memory_space<vmem>>, vector<1x32x192xf32>
    %5 = vector.shape_cast %4 : vector<1x32x192xf32> to vector<32x192xf32>
    %cst = arith.constant dense<0.000000e+00> : vector<32x192xf32>
    %6 = tpu.matmul %3, %5, %cst {dimension_numbers = #tpu.dot_dimension_numbers<[1], [0], [0], [1], [0, 0, 1, 1], [], []>} : vector<32x32xf32>, vector<32x192xf32>, vector<32x192xf32> -> vector<32x192xf32>
    %c0_6 = arith.constant 0 : index
    %c0_7 = arith.constant 0 : index
    %c0_8 = arith.constant 0 : index
    %7 = vector.load %arg3[%c0_6, %c0_7, %c0_8] : memref<2x1x192xf32, #tpu.memory_space<vmem>>, vector<1x1x192xf32>
    %8 = vector.shape_cast %7 : vector<1x1x192xf32> to vector<1x192xf32>
    %9 = vector.broadcast %8 : vector<1x192xf32> to vector<32x192xf32>
    %10 = arith.addf %6, %9 : vector<32x192xf32>
    %11 = vector.extract_strided_slice %10 {offsets = [0, 0], sizes = [8, 96], strides = [1, 1]} : vector<32x192xf32> to vector<8x96xf32>
    %12 = vector.extract_strided_slice %10 {offsets = [8, 0], sizes = [16, 96], strides = [1, 1]} : vector<32x192xf32> to vector<16x96xf32>
    %13 = vector.extract_strided_slice %10 {offsets = [24, 96], sizes = [8, 96], strides = [1, 1]} : vector<32x192xf32> to vector<8x96xf32>
    %cst_9 = arith.constant 0.000000e+00 : f32
    %14 = vector.broadcast %cst_9 : f32 to vector<8x16xf32>
    %15 = vector.extract_strided_slice %11 {offsets = [0, 0], sizes = [8, 16], strides = [1, 1]} : vector<8x96xf32> to vector<8x16xf32>
    %16 = vector.extract_strided_slice %12 {offsets = [0, 32], sizes = [16, 16], strides = [1, 1]} : vector<16x96xf32> to vector<16x16xf32>
    %17 = vector.extract_strided_slice %12 {offsets = [0, 64], sizes = [16, 16], strides = [1, 1]} : vector<16x96xf32> to vector<16x16xf32>
    %cst_10 = arith.constant dense<0.000000e+00> : vector<8x16xf32>
    %18 = tpu.matmul %15, %16, %cst_10 {dimension_numbers = #tpu.dot_dimension_numbers<[1], [1], [0], [0], [0, 0, 1, 0], [], []>} : vector<8x16xf32>, vector<16x16xf32>, vector<8x16xf32> -> vector<8x16xf32>
    %cst_11 = arith.constant dense<0xFF800000> : vector<8xf32>
    %19 = vector.multi_reduction <maximumf>, %18, %cst_11 [1] : vector<8x16xf32> to vector<8xf32>
    %20 = vector.shape_cast %19 : vector<8xf32> to vector<8x1xf32>
    %21 = vector.broadcast %20 : vector<8x1xf32> to vector<8x16xf32>
    %22 = arith.subf %18, %21 : vector<8x16xf32>
    %23 = math.exp %22 : vector<8x16xf32>
    %cst_12 = arith.constant dense<0.000000e+00> : vector<8xf32>
    %24 = vector.multi_reduction <add>, %23, %cst_12 [1] : vector<8x16xf32> to vector<8xf32>
    %25 = vector.shape_cast %24 : vector<8xf32> to vector<8x1xf32>
    %26 = tpu.reciprocal %25 {approx = true} : vector<8x1xf32> -> vector<8x1xf32>
    %27 = vector.broadcast %26 : vector<8x1xf32> to vector<8x16xf32>
    %28 = arith.mulf %23, %27 : vector<8x16xf32>
    %29 = arith.addf %14, %28 : vector<8x16xf32>
    %cst_13 = arith.constant dense<0.000000e+00> : vector<8x16xf32>
    %30 = tpu.matmul %28, %17, %cst_13 {dimension_numbers = #tpu.dot_dimension_numbers<[1], [0], [0], [1], [0, 0, 1, 1], [], []>} : vector<8x16xf32>, vector<16x16xf32>, vector<8x16xf32> -> vector<8x16xf32>
    %31 = vector.extract_strided_slice %11 {offsets = [0, 16], sizes = [8, 16], strides = [1, 1]} : vector<8x96xf32> to vector<8x16xf32>
    %32 = vector.extract_strided_slice %12 {offsets = [0, 48], sizes = [16, 16], strides = [1, 1]} : vector<16x96xf32> to vector<16x16xf32>
    %33 = vector.extract_strided_slice %12 {offsets = [0, 80], sizes = [16, 16], strides = [1, 1]} : vector<16x96xf32> to vector<16x16xf32>
    %cst_14 = arith.constant dense<0.000000e+00> : vector<8x16xf32>
    %34 = tpu.matmul %31, %32, %cst_14 {dimension_numbers = #tpu.dot_dimension_numbers<[1], [1], [0], [0], [0, 0, 1, 0], [], []>} : vector<8x16xf32>, vector<16x16xf32>, vector<8x16xf32> -> vector<8x16xf32>
    %cst_15 = arith.constant dense<0xFF800000> : vector<8xf32>
    %35 = vector.multi_reduction <maximumf>, %34, %cst_15 [1] : vector<8x16xf32> to vector<8xf32>
    %36 = vector.shape_cast %35 : vector<8xf32> to vector<8x1xf32>
    %37 = vector.broadcast %36 : vector<8x1xf32> to vector<8x16xf32>
    %38 = arith.subf %34, %37 : vector<8x16xf32>
    %39 = math.exp %38 : vector<8x16xf32>
    %cst_16 = arith.constant dense<0.000000e+00> : vector<8xf32>
    %40 = vector.multi_reduction <add>, %39, %cst_16 [1] : vector<8x16xf32> to vector<8xf32>
    %41 = vector.shape_cast %40 : vector<8xf32> to vector<8x1xf32>
    %42 = tpu.reciprocal %41 {approx = true} : vector<8x1xf32> -> vector<8x1xf32>
    %43 = vector.broadcast %42 : vector<8x1xf32> to vector<8x16xf32>
    %44 = arith.mulf %39, %43 : vector<8x16xf32>
    %45 = arith.addf %29, %44 : vector<8x16xf32>
    %cst_17 = arith.constant dense<0.000000e+00> : vector<8x16xf32>
    %46 = tpu.matmul %44, %33, %cst_17 {dimension_numbers = #tpu.dot_dimension_numbers<[1], [0], [0], [1], [0, 0, 1, 1], [], []>} : vector<8x16xf32>, vector<16x16xf32>, vector<8x16xf32> -> vector<8x16xf32>
    %47 = tpu.concatenate %30, %46 in 1 : vector<8x16xf32>, vector<8x16xf32> -> vector<8x32xf32>
    %cst_18 = arith.constant 5.000000e-01 : f32
    %48 = vector.broadcast %cst_18 : f32 to vector<8x16xf32>
    %49 = arith.mulf %45, %48 : vector<8x16xf32>
    %cst_19 = arith.constant 0.000000e+00 : f32
    %50 = vector.broadcast %cst_19 : f32 to vector<8x8xf32>
    %51 = vector.extract_strided_slice %13 {offsets = [0, 0], sizes = [8, 16], strides = [1, 1]} : vector<8x96xf32> to vector<8x16xf32>
    %52 = vector.extract_strided_slice %13 {offsets = [0, 32], sizes = [8, 16], strides = [1, 1]} : vector<8x96xf32> to vector<8x16xf32>
    %53 = vector.extract_strided_slice %13 {offsets = [0, 64], sizes = [8, 16], strides = [1, 1]} : vector<8x96xf32> to vector<8x16xf32>
    %cst_20 = arith.constant dense<0.000000e+00> : vector<8x8xf32>
    %54 = tpu.matmul %51, %52, %cst_20 {dimension_numbers = #tpu.dot_dimension_numbers<[1], [1], [0], [0], [0, 0, 1, 0], [], []>} : vector<8x16xf32>, vector<8x16xf32>, vector<8x8xf32> -> vector<8x8xf32>
    %cst_21 = arith.constant dense<0xFF800000> : vector<8xf32>
    %55 = vector.multi_reduction <maximumf>, %54, %cst_21 [1] : vector<8x8xf32> to vector<8xf32>
    %56 = vector.shape_cast %55 : vector<8xf32> to vector<8x1xf32>
    %57 = vector.broadcast %56 : vector<8x1xf32> to vector<8x8xf32>
    %58 = arith.subf %54, %57 : vector<8x8xf32>
    %59 = math.exp %58 : vector<8x8xf32>
    %cst_22 = arith.constant dense<0.000000e+00> : vector<8xf32>
    %60 = vector.multi_reduction <add>, %59, %cst_22 [1] : vector<8x8xf32> to vector<8xf32>
    %61 = vector.shape_cast %60 : vector<8xf32> to vector<8x1xf32>
    %62 = tpu.reciprocal %61 {approx = true} : vector<8x1xf32> -> vector<8x1xf32>
    %63 = vector.broadcast %62 : vector<8x1xf32> to vector<8x8xf32>
    %64 = arith.mulf %59, %63 : vector<8x8xf32>
    %65 = arith.addf %50, %64 : vector<8x8xf32>
    %cst_23 = arith.constant dense<0.000000e+00> : vector<8x16xf32>
    %66 = tpu.matmul %64, %53, %cst_23 {dimension_numbers = #tpu.dot_dimension_numbers<[1], [0], [0], [1], [0, 0, 1, 1], [], []>} : vector<8x8xf32>, vector<8x16xf32>, vector<8x16xf32> -> vector<8x16xf32>
    %67 = vector.extract_strided_slice %13 {offsets = [0, 16], sizes = [8, 16], strides = [1, 1]} : vector<8x96xf32> to vector<8x16xf32>
    %68 = vector.extract_strided_slice %13 {offsets = [0, 48], sizes = [8, 16], strides = [1, 1]} : vector<8x96xf32> to vector<8x16xf32>
    %69 = vector.extract_strided_slice %13 {offsets = [0, 80], sizes = [8, 16], strides = [1, 1]} : vector<8x96xf32> to vector<8x16xf32>
    %cst_24 = arith.constant dense<0.000000e+00> : vector<8x8xf32>
    %70 = tpu.matmul %67, %68, %cst_24 {dimension_numbers = #tpu.dot_dimension_numbers<[1], [1], [0], [0], [0, 0, 1, 0], [], []>} : vector<8x16xf32>, vector<8x16xf32>, vector<8x8xf32> -> vector<8x8xf32>
    %cst_25 = arith.constant dense<0xFF800000> : vector<8xf32>
    %71 = vector.multi_reduction <maximumf>, %70, %cst_25 [1] : vector<8x8xf32> to vector<8xf32>
    %72 = vector.shape_cast %71 : vector<8xf32> to vector<8x1xf32>
    %73 = vector.broadcast %72 : vector<8x1xf32> to vector<8x8xf32>
    %74 = arith.subf %70, %73 : vector<8x8xf32>
    %75 = math.exp %74 : vector<8x8xf32>
    %cst_26 = arith.constant dense<0.000000e+00> : vector<8xf32>
    %76 = vector.multi_reduction <add>, %75, %cst_26 [1] : vector<8x8xf32> to vector<8xf32>
    %77 = vector.shape_cast %76 : vector<8xf32> to vector<8x1xf32>
    %78 = tpu.reciprocal %77 {approx = true} : vector<8x1xf32> -> vector<8x1xf32>
    %79 = vector.broadcast %78 : vector<8x1xf32> to vector<8x8xf32>
    %80 = arith.mulf %75, %79 : vector<8x8xf32>
    %81 = arith.addf %65, %80 : vector<8x8xf32>
    %cst_27 = arith.constant dense<0.000000e+00> : vector<8x16xf32>
    %82 = tpu.matmul %80, %69, %cst_27 {dimension_numbers = #tpu.dot_dimension_numbers<[1], [0], [0], [1], [0, 0, 1, 1], [], []>} : vector<8x8xf32>, vector<8x16xf32>, vector<8x16xf32> -> vector<8x16xf32>
    %83 = tpu.concatenate %66, %82 in 1 : vector<8x16xf32>, vector<8x16xf32> -> vector<8x32xf32>
    %cst_28 = arith.constant 5.000000e-01 : f32
    %84 = vector.broadcast %cst_28 : f32 to vector<8x8xf32>
    %85 = arith.mulf %81, %84 : vector<8x8xf32>
    %86 = tpu.concatenate %47, %83 in 1 : vector<8x32xf32>, vector<8x32xf32> -> vector<8x64xf32>
    %c0_29 = arith.constant 0 : index
    %c0_30 = arith.constant 0 : index
    %c0_31 = arith.constant 0 : index
    %87 = vector.load %arg4[%c0_29, %c0_30, %c0_31] : memref<2x64x64xf32, #tpu.memory_space<vmem>>, vector<1x64x64xf32>
    %88 = vector.shape_cast %87 : vector<1x64x64xf32> to vector<64x64xf32>
    %cst_32 = arith.constant dense<0.000000e+00> : vector<8x64xf32>
    %89 = tpu.matmul %86, %88, %cst_32 {dimension_numbers = #tpu.dot_dimension_numbers<[1], [0], [0], [1], [0, 0, 1, 1], [], []>} : vector<8x64xf32>, vector<64x64xf32>, vector<8x64xf32> -> vector<8x64xf32>
    %c0_33 = arith.constant 0 : index
    %c0_34 = arith.constant 0 : index
    %c0_35 = arith.constant 0 : index
    %90 = vector.load %arg5[%c0_33, %c0_34, %c0_35] : memref<2x1x64xf32, #tpu.memory_space<vmem>>, vector<1x1x64xf32>
    %91 = vector.shape_cast %90 : vector<1x1x64xf32> to vector<1x64xf32>
    %92 = vector.broadcast %91 : vector<1x64xf32> to vector<8x64xf32>
    %93 = arith.addf %89, %92 : vector<8x64xf32>
    %94 = vector.extract_strided_slice %93 {offsets = [0, 0], sizes = [8, 32], strides = [1, 1]} : vector<8x64xf32> to vector<8x32xf32>
    %95 = vector.extract_strided_slice %93 {offsets = [0, 32], sizes = [8, 32], strides = [1, 1]} : vector<8x64xf32> to vector<8x32xf32>
    %96 = tpu.concatenate %94, %95 in 0 : vector<8x32xf32>, vector<8x32xf32> -> vector<16x32xf32>
    %c1 = arith.constant 1 : index
    %c0_36 = arith.constant 0 : index
    %c0_37 = arith.constant 0 : index
    %97 = vector.load %arg2[%c1, %c0_36, %c0_37] : memref<2x32x192xf32, #tpu.memory_space<vmem>>, vector<1x32x192xf32>
    %98 = vector.shape_cast %97 : vector<1x32x192xf32> to vector<32x192xf32>
    %cst_38 = arith.constant dense<0.000000e+00> : vector<16x192xf32>
    %99 = tpu.matmul %96, %98, %cst_38 {dimension_numbers = #tpu.dot_dimension_numbers<[1], [0], [0], [1], [0, 0, 1, 1], [], []>} : vector<16x32xf32>, vector<32x192xf32>, vector<16x192xf32> -> vector<16x192xf32>
    %c1_39 = arith.constant 1 : index
    %c0_40 = arith.constant 0 : index
    %c0_41 = arith.constant 0 : index
    %100 = vector.load %arg3[%c1_39, %c0_40, %c0_41] : memref<2x1x192xf32, #tpu.memory_space<vmem>>, vector<1x1x192xf32>
    %101 = vector.shape_cast %100 : vector<1x1x192xf32> to vector<1x192xf32>
    %102 = vector.broadcast %101 : vector<1x192xf32> to vector<16x192xf32>
    %103 = arith.addf %99, %102 : vector<16x192xf32>
    %104 = vector.extract_strided_slice %103 {offsets = [0, 0], sizes = [8, 96], strides = [1, 1]} : vector<16x192xf32> to vector<8x96xf32>
    %105 = vector.extract_strided_slice %103 {offsets = [8, 0], sizes = [8, 96], strides = [1, 1]} : vector<16x192xf32> to vector<8x96xf32>
    %106 = vector.extract_strided_slice %103 {offsets = [0, 96], sizes = [8, 96], strides = [1, 1]} : vector<16x192xf32> to vector<8x96xf32>
    %107 = vector.extract_strided_slice %103 {offsets = [8, 96], sizes = [8, 96], strides = [1, 1]} : vector<16x192xf32> to vector<8x96xf32>
    %cst_42 = arith.constant 0.000000e+00 : f32
    %108 = vector.broadcast %cst_42 : f32 to vector<8x8xf32>
    %109 = vector.extract_strided_slice %104 {offsets = [0, 0], sizes = [8, 16], strides = [1, 1]} : vector<8x96xf32> to vector<8x16xf32>
    %110 = vector.extract_strided_slice %105 {offsets = [0, 32], sizes = [8, 16], strides = [1, 1]} : vector<8x96xf32> to vector<8x16xf32>
    %111 = vector.extract_strided_slice %105 {offsets = [0, 64], sizes = [8, 16], strides = [1, 1]} : vector<8x96xf32> to vector<8x16xf32>
    %cst_43 = arith.constant dense<0.000000e+00> : vector<8x8xf32>
    %112 = tpu.matmul %109, %110, %cst_43 {dimension_numbers = #tpu.dot_dimension_numbers<[1], [1], [0], [0], [0, 0, 1, 0], [], []>} : vector<8x16xf32>, vector<8x16xf32>, vector<8x8xf32> -> vector<8x8xf32>
    %cst_44 = arith.constant dense<0xFF800000> : vector<8xf32>
    %113 = vector.multi_reduction <maximumf>, %112, %cst_44 [1] : vector<8x8xf32> to vector<8xf32>
    %114 = vector.shape_cast %113 : vector<8xf32> to vector<8x1xf32>
    %115 = vector.broadcast %114 : vector<8x1xf32> to vector<8x8xf32>
    %116 = arith.subf %112, %115 : vector<8x8xf32>
    %117 = math.exp %116 : vector<8x8xf32>
    %cst_45 = arith.constant dense<0.000000e+00> : vector<8xf32>
    %118 = vector.multi_reduction <add>, %117, %cst_45 [1] : vector<8x8xf32> to vector<8xf32>
    %119 = vector.shape_cast %118 : vector<8xf32> to vector<8x1xf32>
    %120 = tpu.reciprocal %119 {approx = true} : vector<8x1xf32> -> vector<8x1xf32>
    %121 = vector.broadcast %120 : vector<8x1xf32> to vector<8x8xf32>
    %122 = arith.mulf %117, %121 : vector<8x8xf32>
    %123 = arith.addf %108, %122 : vector<8x8xf32>
    %cst_46 = arith.constant dense<0.000000e+00> : vector<8x16xf32>
    %124 = tpu.matmul %122, %111, %cst_46 {dimension_numbers = #tpu.dot_dimension_numbers<[1], [0], [0], [1], [0, 0, 1, 1], [], []>} : vector<8x8xf32>, vector<8x16xf32>, vector<8x16xf32> -> vector<8x16xf32>
    %125 = vector.extract_strided_slice %104 {offsets = [0, 16], sizes = [8, 16], strides = [1, 1]} : vector<8x96xf32> to vector<8x16xf32>
    %126 = vector.extract_strided_slice %105 {offsets = [0, 48], sizes = [8, 16], strides = [1, 1]} : vector<8x96xf32> to vector<8x16xf32>
    %127 = vector.extract_strided_slice %105 {offsets = [0, 80], sizes = [8, 16], strides = [1, 1]} : vector<8x96xf32> to vector<8x16xf32>
    %cst_47 = arith.constant dense<0.000000e+00> : vector<8x8xf32>
    %128 = tpu.matmul %125, %126, %cst_47 {dimension_numbers = #tpu.dot_dimension_numbers<[1], [1], [0], [0], [0, 0, 1, 0], [], []>} : vector<8x16xf32>, vector<8x16xf32>, vector<8x8xf32> -> vector<8x8xf32>
    %cst_48 = arith.constant dense<0xFF800000> : vector<8xf32>
    %129 = vector.multi_reduction <maximumf>, %128, %cst_48 [1] : vector<8x8xf32> to vector<8xf32>
    %130 = vector.shape_cast %129 : vector<8xf32> to vector<8x1xf32>
    %131 = vector.broadcast %130 : vector<8x1xf32> to vector<8x8xf32>
    %132 = arith.subf %128, %131 : vector<8x8xf32>
    %133 = math.exp %132 : vector<8x8xf32>
    %cst_49 = arith.constant dense<0.000000e+00> : vector<8xf32>
    %134 = vector.multi_reduction <add>, %133, %cst_49 [1] : vector<8x8xf32> to vector<8xf32>
    %135 = vector.shape_cast %134 : vector<8xf32> to vector<8x1xf32>
    %136 = tpu.reciprocal %135 {approx = true} : vector<8x1xf32> -> vector<8x1xf32>
    %137 = vector.broadcast %136 : vector<8x1xf32> to vector<8x8xf32>
    %138 = arith.mulf %133, %137 : vector<8x8xf32>
    %139 = arith.addf %123, %138 : vector<8x8xf32>
    %cst_50 = arith.constant dense<0.000000e+00> : vector<8x16xf32>
    %140 = tpu.matmul %138, %127, %cst_50 {dimension_numbers = #tpu.dot_dimension_numbers<[1], [0], [0], [1], [0, 0, 1, 1], [], []>} : vector<8x8xf32>, vector<8x16xf32>, vector<8x16xf32> -> vector<8x16xf32>
    %141 = tpu.concatenate %124, %140 in 1 : vector<8x16xf32>, vector<8x16xf32> -> vector<8x32xf32>
    %cst_51 = arith.constant 5.000000e-01 : f32
    %142 = vector.broadcast %cst_51 : f32 to vector<8x8xf32>
    %143 = arith.mulf %139, %142 : vector<8x8xf32>
    %cst_52 = arith.constant 0.000000e+00 : f32
    %144 = vector.broadcast %cst_52 : f32 to vector<8x8xf32>
    %145 = vector.extract_strided_slice %107 {offsets = [0, 0], sizes = [8, 16], strides = [1, 1]} : vector<8x96xf32> to vector<8x16xf32>
    %146 = vector.extract_strided_slice %106 {offsets = [0, 32], sizes = [8, 16], strides = [1, 1]} : vector<8x96xf32> to vector<8x16xf32>
    %147 = vector.extract_strided_slice %106 {offsets = [0, 64], sizes = [8, 16], strides = [1, 1]} : vector<8x96xf32> to vector<8x16xf32>
    %cst_53 = arith.constant dense<0.000000e+00> : vector<8x8xf32>
    %148 = tpu.matmul %145, %146, %cst_53 {dimension_numbers = #tpu.dot_dimension_numbers<[1], [1], [0], [0], [0, 0, 1, 0], [], []>} : vector<8x16xf32>, vector<8x16xf32>, vector<8x8xf32> -> vector<8x8xf32>
    %cst_54 = arith.constant dense<0xFF800000> : vector<8xf32>
    %149 = vector.multi_reduction <maximumf>, %148, %cst_54 [1] : vector<8x8xf32> to vector<8xf32>
    %150 = vector.shape_cast %149 : vector<8xf32> to vector<8x1xf32>
    %151 = vector.broadcast %150 : vector<8x1xf32> to vector<8x8xf32>
    %152 = arith.subf %148, %151 : vector<8x8xf32>
    %153 = math.exp %152 : vector<8x8xf32>
    %cst_55 = arith.constant dense<0.000000e+00> : vector<8xf32>
    %154 = vector.multi_reduction <add>, %153, %cst_55 [1] : vector<8x8xf32> to vector<8xf32>
    %155 = vector.shape_cast %154 : vector<8xf32> to vector<8x1xf32>
    %156 = tpu.reciprocal %155 {approx = true} : vector<8x1xf32> -> vector<8x1xf32>
    %157 = vector.broadcast %156 : vector<8x1xf32> to vector<8x8xf32>
    %158 = arith.mulf %153, %157 : vector<8x8xf32>
    %159 = arith.addf %144, %158 : vector<8x8xf32>
    %cst_56 = arith.constant dense<0.000000e+00> : vector<8x16xf32>
    %160 = tpu.matmul %158, %147, %cst_56 {dimension_numbers = #tpu.dot_dimension_numbers<[1], [0], [0], [1], [0, 0, 1, 1], [], []>} : vector<8x8xf32>, vector<8x16xf32>, vector<8x16xf32> -> vector<8x16xf32>
    %161 = vector.extract_strided_slice %107 {offsets = [0, 16], sizes = [8, 16], strides = [1, 1]} : vector<8x96xf32> to vector<8x16xf32>
    %162 = vector.extract_strided_slice %106 {offsets = [0, 48], sizes = [8, 16], strides = [1, 1]} : vector<8x96xf32> to vector<8x16xf32>
    %163 = vector.extract_strided_slice %106 {offsets = [0, 80], sizes = [8, 16], strides = [1, 1]} : vector<8x96xf32> to vector<8x16xf32>
    %cst_57 = arith.constant dense<0.000000e+00> : vector<8x8xf32>
    %164 = tpu.matmul %161, %162, %cst_57 {dimension_numbers = #tpu.dot_dimension_numbers<[1], [1], [0], [0], [0, 0, 1, 0], [], []>} : vector<8x16xf32>, vector<8x16xf32>, vector<8x8xf32> -> vector<8x8xf32>
    %cst_58 = arith.constant dense<0xFF800000> : vector<8xf32>
    %165 = vector.multi_reduction <maximumf>, %164, %cst_58 [1] : vector<8x8xf32> to vector<8xf32>
    %166 = vector.shape_cast %165 : vector<8xf32> to vector<8x1xf32>
    %167 = vector.broadcast %166 : vector<8x1xf32> to vector<8x8xf32>
    %168 = arith.subf %164, %167 : vector<8x8xf32>
    %169 = math.exp %168 : vector<8x8xf32>
    %cst_59 = arith.constant dense<0.000000e+00> : vector<8xf32>
    %170 = vector.multi_reduction <add>, %169, %cst_59 [1] : vector<8x8xf32> to vector<8xf32>
    %171 = vector.shape_cast %170 : vector<8xf32> to vector<8x1xf32>
    %172 = tpu.reciprocal %171 {approx = true} : vector<8x1xf32> -> vector<8x1xf32>
    %173 = vector.broadcast %172 : vector<8x1xf32> to vector<8x8xf32>
    %174 = arith.mulf %169, %173 : vector<8x8xf32>
    %175 = arith.addf %159, %174 : vector<8x8xf32>
    %cst_60 = arith.constant dense<0.000000e+00> : vector<8x16xf32>
    %176 = tpu.matmul %174, %163, %cst_60 {dimension_numbers = #tpu.dot_dimension_numbers<[1], [0], [0], [1], [0, 0, 1, 1], [], []>} : vector<8x8xf32>, vector<8x16xf32>, vector<8x16xf32> -> vector<8x16xf32>
    %177 = tpu.concatenate %160, %176 in 1 : vector<8x16xf32>, vector<8x16xf32> -> vector<8x32xf32>
    %cst_61 = arith.constant 5.000000e-01 : f32
    %178 = vector.broadcast %cst_61 : f32 to vector<8x8xf32>
    %179 = arith.mulf %175, %178 : vector<8x8xf32>
    %180 = tpu.concatenate %141, %177 in 1 : vector<8x32xf32>, vector<8x32xf32> -> vector<8x64xf32>
    %c1_62 = arith.constant 1 : index
    %c0_63 = arith.constant 0 : index
    %c0_64 = arith.constant 0 : index
    %181 = vector.load %arg4[%c1_62, %c0_63, %c0_64] : memref<2x64x64xf32, #tpu.memory_space<vmem>>, vector<1x64x64xf32>
    %182 = vector.shape_cast %181 : vector<1x64x64xf32> to vector<64x64xf32>
    %cst_65 = arith.constant dense<0.000000e+00> : vector<8x64xf32>
    %183 = tpu.matmul %180, %182, %cst_65 {dimension_numbers = #tpu.dot_dimension_numbers<[1], [0], [0], [1], [0, 0, 1, 1], [], []>} : vector<8x64xf32>, vector<64x64xf32>, vector<8x64xf32> -> vector<8x64xf32>
    %c1_66 = arith.constant 1 : index
    %c0_67 = arith.constant 0 : index
    %c0_68 = arith.constant 0 : index
    %184 = vector.load %arg5[%c1_66, %c0_67, %c0_68] : memref<2x1x64xf32, #tpu.memory_space<vmem>>, vector<1x1x64xf32>
    %185 = vector.shape_cast %184 : vector<1x1x64xf32> to vector<1x64xf32>
    %186 = vector.broadcast %185 : vector<1x64xf32> to vector<8x64xf32>
    %187 = arith.addf %183, %186 : vector<8x64xf32>
    %cst_69 = arith.constant 0.000000e+00 : f32
    %188 = vector.broadcast %cst_69 : f32 to vector<8x88xf32>
    %189 = tpu.concatenate %93, %187, %49, %85, %143, %179, %188 in 1 : vector<8x64xf32>, vector<8x64xf32>, vector<8x16xf32>, vector<8x8xf32>, vector<8x8xf32>, vector<8x8xf32>, vector<8x88xf32> -> vector<8x256xf32>
    %c0_70 = arith.constant 0 : index
    %c0_71 = arith.constant 0 : index
    %190 = vector.load %arg6[%c0_70, %c0_71] : memref<8x256xf32, #tpu.memory_space<vmem>>, vector<8x256xf32>
    tpu.vector_store %arg6[%c0_70, %c0_71], %189 {strides = array<i32>} : memref<8x256xf32, #tpu.memory_space<vmem>>, vector<8x256xf32>,
    return
  }
}

</mosaic_0001>

<llo_original>
// kernel: tpu_custom_call.1
$region0: #{tpu_custom_call.1}
  #allocation0 [shape = 'u32[]', space=smem, size = 0x4, offset = 0x4, fixed_abs, tag = 'smem constant byte address 0x4 - core index']
  #allocation1 [shape = 'u32[144,128]{1,0:T(1,128)}', space=vmem, size = 0x12000, scoped, tag = 'internal scratch']
  %s0 = inlined_call_operand.hbm [shape: f32[8,32], index: 0, kind: input, shape index: {}]
  %s1 = inlined_call_operand.hbm [shape: f32[16,32], index: 1, kind: input, shape index: {}]
  %s2 = inlined_call_operand.hbm [shape: f32[2,32,192], index: 2, kind: input, shape index: {}]
  %s3 = inlined_call_operand.vmem [shape: f32[2,1,192], index: 3, kind: input, shape index: {}]
  %s4 = inlined_call_operand.hbm [shape: f32[2,64,64], index: 4, kind: input, shape index: {}]
  %s5 = inlined_call_operand.vmem [shape: f32[2,1,64], index: 5, kind: input, shape index: {}]
  %s6 = inlined_call_operand.hbm [shape: f32[8,256], index: 6, kind: output, shape index: {}]
  %s7 = sld [smem:[#allocation0]]
  $region50: #{tpu_custom_call.1} parent=0
    _
  %s9 = ssub.s32 1, %s7
  %s10 = scalar_select 0, %s9, %s7
  $region1: #{tpu_custom_call.1} parent=0
    #allocation2 [shape = 'u8[4096]{0}', space=vmem, size = 0x1000, scoped, tag = 'input window, operand 0, single buffered']
    #allocation3 [shape = 's32[1]{0}', space=sflag, size = 0x4, scoped, tag = 'scoped memory for tpu_custom_call.1']
    #allocation4 [shape = 's32[1]{0}', space=sflag, size = 0x4, scoped, tag = 'scoped memory for tpu_custom_call.1']
    #allocation5 [shape = 'u8[8192]{0}', space=vmem, size = 0x2000, scoped, tag = 'input window, operand 1, single buffered']
    #allocation6 [shape = 's32[1]{0}', space=sflag, size = 0x4, scoped, tag = 'scoped memory for tpu_custom_call.1']
    #allocation7 [shape = 'u8[65536]{0}', space=vmem, size = 0x10000, scoped, tag = 'input window, operand 2, single buffered']
    #allocation8 [shape = 'u8[65536]{0}', space=vmem, size = 0x10000, scoped, tag = 'input window, operand 4, single buffered']
    #allocation9 [shape = 's32[1]{0}', space=sflag, size = 0x4, scoped, tag = 'scoped memory for tpu_custom_call.1']
    #allocation10 [shape = 'u8[8192]{0}', space=vmem, size = 0x2000, scoped, tag = 'output window, operand 0, single buffered']
    %11 = vsyncpa [#allocation3], 0
    %12 = vsyncpa [#allocation6], 0
    %13 = vsyncpa [#allocation9], 0
    %14 = vsyncpa [#allocation4], 0
    // Predicated region
    $region2: #{tpu_custom_call.1} parent=1 // pred_check
      _
    $region3: #{tpu_custom_call.1} parent=1 // pred_check_branch
      %16 = sbr.rel (0) target = $region5
    $region4: #{tpu_custom_call.1} parent=1 // pred_region
      %s18 = ssub.s32 128, 128
      %19 = vsyncadd [#allocation3], %s18
      %s21 = sshll.u32 [#allocation2], 4
      %s22 = int_to_ptr.vmem [resolvable:$true] %s21
      %24 = dma.hbm_to_vmem [thread:$0]  %s0, 128, %s22, [#allocation3]
    $region5: #{tpu_custom_call.1} parent=1 // pred_fallthru
      _
    // Predicated region
    $region6: #{tpu_custom_call.1} parent=1 // pred_check
      _
    $region7: #{tpu_custom_call.1} parent=1 // pred_check_branch
      %26 = sbr.rel (0) target = $region9
    $region8: #{tpu_custom_call.1} parent=1 // pred_region
      %s28 = ssub.s32 256, 256
      %29 = vsyncadd [#allocation6], %s28
      %s30 = sshll.u32 [#allocation5], 4
      %s31 = int_to_ptr.vmem [resolvable:$true] %s30
      %36 = dma.hbm_to_vmem [thread:$0]  %s1, 256, %s31, [#allocation6], 128, 128, 8
    $region9: #{tpu_custom_call.1} parent=1 // pred_fallthru
      _
    // Predicated region
    $region10: #{tpu_custom_call.1} parent=1 // pred_check
      _
    $region11: #{tpu_custom_call.1} parent=1 // pred_check_branch
      %38 = sbr.rel (0) target = $region13
    $region12: #{tpu_custom_call.1} parent=1 // pred_region
      %s40 = ssub.s32 2048, 2048
      %41 = vsyncadd [#allocation6], %s40
      %s42 = sshll.u32 [#allocation7], 4
      %s43 = int_to_ptr.vmem [resolvable:$true] %s42
      %48 = dma.hbm_to_vmem [thread:$0]  %s2, 2048, %s43, [#allocation6], 256, 256, 16
    $region13: #{tpu_custom_call.1} parent=1 // pred_fallthru
      _
    // Predicated region
    $region14: #{tpu_custom_call.1} parent=1 // pred_check
      _
    $region15: #{tpu_custom_call.1} parent=1 // pred_check_branch
      %50 = sbr.rel (0) target = $region17
    $region16: #{tpu_custom_call.1} parent=1 // pred_region
      _
    $region17: #{tpu_custom_call.1} parent=1 // pred_fallthru
      _
    // Predicated region
    $region18: #{tpu_custom_call.1} parent=1 // pred_check
      _
    $region19: #{tpu_custom_call.1} parent=1 // pred_check_branch
      %52 = sbr.rel (0) target = $region21
    $region20: #{tpu_custom_call.1} parent=1 // pred_region
      %s54 = ssub.s32 2048, 2048
      %55 = vsyncadd [#allocation9], %s54
      %s56 = sshll.u32 [#allocation8], 4
      %s57 = int_to_ptr.vmem [resolvable:$true] %s56
      %62 = dma.hbm_to_vmem [thread:$0]  %s4, 2048, %s57, [#allocation9], 128, 128, 8
    $region21: #{tpu_custom_call.1} parent=1 // pred_fallthru
      _
    // Predicated region
    $region22: #{tpu_custom_call.1} parent=1 // pred_check
      _
    $region23: #{tpu_custom_call.1} parent=1 // pred_check_branch
      %64 = sbr.rel (0) target = $region25
    $region24: #{tpu_custom_call.1} parent=1 // pred_region
      _
    $region25: #{tpu_custom_call.1} parent=1 // pred_fallthru
      _
    // Predicated region
    $region26: #{tpu_custom_call.1} parent=1 // pred_check
      _
    $region27: #{tpu_custom_call.1} parent=1 // pred_check_branch
      %66 = sbr.rel (0) target = $region29
    $region28: #{tpu_custom_call.1} parent=1 // pred_region
      %67 = dma.done [#allocation3], 128
    $region29: #{tpu_custom_call.1} parent=1 // pred_fallthru
      _
    // Predicated region
    $region30: #{tpu_custom_call.1} parent=1 // pred_check
      _
    $region31: #{tpu_custom_call.1} parent=1 // pred_check_branch
      %69 = sbr.rel (0) target = $region33
    $region32: #{tpu_custom_call.1} parent=1 // pred_region
      %70 = dma.done [#allocation6], 256
    $region33: #{tpu_custom_call.1} parent=1 // pred_fallthru
      _
    // Predicated region
    $region34: #{tpu_custom_call.1} parent=1 // pred_check
      _
    $region35: #{tpu_custom_call.1} parent=1 // pred_check_branch
      %72 = sbr.rel (0) target = $region37
    $region36: #{tpu_custom_call.1} parent=1 // pred_region
      %73 = dma.done [#allocation6], 2048
    $region37: #{tpu_custom_call.1} parent=1 // pred_fallthru
      _
    // Predicated region
    $region38: #{tpu_custom_call.1} parent=1 // pred_check
      _
    $region39: #{tpu_custom_call.1} parent=1 // pred_check_branch
      %75 = sbr.rel (0) target = $region41
    $region40: #{tpu_custom_call.1} parent=1 // pred_region
      %76 = dma.done [#allocation9], 2048
    $region41: #{tpu_custom_call.1} parent=1 // pred_fallthru
      _
    %v77 = vld [vmem:[#allocation2] sm:$0xff]
    %v78 = vld [vmem:[#allocation5] sm:$0xff]
    %v79 = vld [vmem:[#allocation5 + $0x8] sm:$0xff]
    %v80 = vand.u32 2147483647, %v77
    %v81 = vld [vmem:[#allocation7] sm:$0xff]
    %v82 = vld [vmem:[#allocation7 + $0x8] sm:$0xff]
    %v83 = vld [vmem:[#allocation7 + $0x10] sm:$0xff]
    %v84 = vld [vmem:[#allocation7 + $0x18] sm:$0xff]
    %v85 = vld [vmem:[#allocation7 + $0x20] sm:$0xff]
    %v86 = vld [vmem:[#allocation7 + $0x28] sm:$0xff]
    %v87 = vld [vmem:[#allocation7 + $0x30] sm:$0xff]
    %v88 = vld [vmem:[#allocation7 + $0x38] sm:$0xff]
    %v89 = vld [vmem:[%s3] sm:$0x3]
    %v91 = vlaneseq
    %v92 = vshrl.u32 %v91, 7
    %v93 = vsub.s32 0, %v92
    %v94 = vrot.slane %v89, %v93
    %v95 = vlaneseq
    %v96 = vshrl.u32 %v95, 7
    %v97 = vsub.s32 1, %v96
    %v98 = vrot.slane %v89, %v97
    %vm101 = vcmask 261120
    %v103 = vsel %vm101, %v77, 0
    %v106 = vsel %vm101, %v78, 0
    %v109 = vsel %vm101, %v79, 0
    %v112 = vsel %vm101, %v80, 0
    %114 = vmatprep.subr.mxu0 %v82
    %115 = vmatpush1.msra.mxu0 %v81
    %116 = vmatprep.subr.mxu0 %v84
    %117 = vmatpush1.msra.mxu0 %v83
    %118 = vmatprep.subr.mxu0 %v86
    %119 = vmatpush1.msra.mxu0 %v85
    %120 = vmatprep.subr.mxu0 %v88
    %121 = vmatpush1.msra.mxu0 %v87
    %122 = vmatprep.subr.mxu0 0.0
    %123 = vmatpush1.msra.mxu0 0.0
    %124 = vmatprep.subr.mxu0 0.0
    %125 = vmatpush1.msra.mxu0 0.0
    %126 = vmatprep.subr.mxu0 0.0
    %127 = vmatpush1.msra.mxu0 0.0
    %128 = vmatprep.subr.mxu0 0.0
    %129 = vmatpush1.msra.mxu0 0.0
    %130 = vmatprep.subr.mxu0 0.0
    %131 = vmatpush1.msra.mxu0 0.0
    %132 = vmatprep.subr.mxu0 0.0
    %133 = vmatpush1.msra.mxu0 0.0
    %134 = vmatprep.subr.mxu0 0.0
    %135 = vmatpush1.msra.mxu0 0.0
    %136 = vmatprep.subr.mxu0 0.0
    %137 = vmatpush1.msra.mxu0 0.0
    %138 = vmatprep.subr.mxu0 0.0
    %139 = vmatpush1.msra.mxu0 0.0
    %140 = vmatprep.subr.mxu0 0.0
    %141 = vmatpush1.msra.mxu0 0.0
    %142 = vmatprep.subr.mxu0 0.0
    %143 = vmatpush1.msra.mxu0 0.0
    %144 = vmatprep.subr.mxu0 0.0
    %145 = vmatpush1.msra.mxu0 0.0
    %146 = vmatprep.subr.mxu0 0.0
    %147 = vmatpush1.msra.mxu0 0.0
    %148 = vmatprep.subr.mxu0 0.0
    %149 = vmatpush1.msra.mxu0 0.0
    %150 = vmatprep.subr.mxu0 0.0
    %151 = vmatpush1.msra.mxu0 0.0
    %152 = vmatprep.subr.mxu0 0.0
    %153 = vmatpush1.msra.mxu0 0.0
    %154 = vmatprep.subr.mxu0 0.0
    %155 = vmatpush1.msra.mxu0 0.0
    %156 = vmatprep.subr.mxu0 0.0
    %157 = vmatpush1.msra.mxu0 0.0
    %158 = vmatprep.subr.mxu0 0.0
    %159 = vmatpush1.msra.mxu0 0.0
    %160 = vmatprep.subr.mxu0 0.0
    %161 = vmatpush1.msra.mxu0 0.0
    %162 = vmatprep.subr.mxu0 0.0
    %163 = vmatpush1.msra.mxu0 0.0
    %164 = vmatprep.subr.mxu0 0.0
    %165 = vmatpush1.msra.mxu0 0.0
    %166 = vmatprep.subr.mxu0 0.0
    %167 = vmatpush1.msra.mxu0 0.0
    %168 = vmatprep.subr.mxu0 0.0
    %169 = vmatpush1.msra.mxu0 0.0
    %170 = vmatprep.subr.mxu0 0.0
    %171 = vmatpush1.msra.mxu0 0.0
    %172 = vmatprep.subr.mxu0 0.0
    %173 = vmatpush1.msra.mxu0 0.0
    %174 = vmatprep.subr.mxu0 0.0
    %175 = vmatpush1.msra.mxu0 0.0
    %176 = vmatprep.subr.mxu0 0.0
    %177 = vmatpush1.msra.mxu0 0.0
    %178 = vmatprep.mubr.f32.mxu0 0.0
    %179 = vmatmul.mubr.f32.gmra.mrb[0].mxu0 %v103
    %v180 = vpop.f32.mrb[0].mxu0
    %v181 = vadd.f32 %v94, %v180
    %v182 = vpop.f32.mrb[0].mxu0
    %183 = vmatprep.mubr.f32.mxu0 0.0
    %184 = vmatmul.mubr.f32.gmra.mrb[0].mxu0 %v106
    %v185 = vpop.f32.mrb[0].mxu0
    %v186 = vadd.f32 %v94, %v185
    %v187 = vpop.f32.mrb[0].mxu0
    %188 = vmatprep.mubr.f32.mxu0 0.0
    %189 = vmatmul.mubr.f32.gmra.mrb[0].mxu0 %v109
    %v190 = vpop.f32.mrb[0].mxu0
    %v191 = vadd.f32 %v94, %v190
    %v192 = vpop.f32.mrb[0].mxu0
    %193 = vmatprep.mubr.f32.mxu0 0.0
    %194 = vmatmul.mubr.f32.gmra.mrb[0].mxu0 %v112
    %v195 = vpop.f32.mrb[0].mxu0
    %v196 = vadd.f32 %v94, %v195
    %v197 = vpop.f32.mrb[0].mxu0
    %v198 = vadd.f32 %v98, %v197
    %199 = vdwg.mxu0
    %202 = vrot.lane.b32.xlu0 %v186, 96
    %v203 = vpop.permute.xlu0 %202
    %204 = vrot.lane.b32.xlu0 %v191, 96
    %v205 = vpop.permute.xlu0 %204
    %vm206 = vcmask 130048
    %v208 = vsel %vm206, %v181, 0
    %v210 = vsel %vm206, %v203, 0
    %v212 = vsel %vm206, %v205, 0
    %214 = vmatprep.subr.mxu0 0.0
    %215 = vmatpush1.xpose.msra.mxu0 %v210
    %216 = vmatprep.subr.mxu0 0.0
    %217 = vmatpush1.xpose.msra.mxu0 %v212
    %218 = vmatprep.subr.mxu0 0.0
    %219 = vmatpush1.xpose.msra.mxu0 0.0
    %220 = vmatprep.subr.mxu0 0.0
    %221 = vmatpush1.xpose.msra.mxu0 0.0
    %222 = vmatprep.subr.mxu0 0.0
    %223 = vmatpush1.xpose.msra.mxu0 0.0
    %224 = vmatprep.subr.mxu0 0.0
    %225 = vmatpush1.xpose.msra.mxu0 0.0
    %226 = vmatprep.subr.mxu0 0.0
    %227 = vmatpush1.xpose.msra.mxu0 0.0
    %228 = vmatprep.subr.mxu0 0.0
    %229 = vmatpush1.xpose.msra.mxu0 0.0
    %230 = vmatprep.subr.mxu0 0.0
    %231 = vmatpush1.xpose.msra.mxu0 0.0
    %232 = vmatprep.subr.mxu0 0.0
    %233 = vmatpush1.xpose.msra.mxu0 0.0
    %234 = vmatprep.subr.mxu0 0.0
    %235 = vmatpush1.xpose.msra.mxu0 0.0
    %236 = vmatprep.subr.mxu0 0.0
    %237 = vmatpush1.xpose.msra.mxu0 0.0
    %238 = vmatprep.subr.mxu0 0.0
    %239 = vmatpush1.xpose.msra.mxu0 0.0
    %240 = vmatprep.subr.mxu0 0.0
    %241 = vmatpush1.xpose.msra.mxu0 0.0
    %242 = vmatprep.subr.mxu0 0.0
    %243 = vmatpush1.xpose.msra.mxu0 0.0
    %244 = vmatprep.subr.mxu0 0.0
    %245 = vmatpush1.xpose.msra.mxu0 0.0
    %246 = vmatprep.subr.mxu0 0.0
    %247 = vmatpush1.xpose.msra.mxu0 0.0
    %248 = vmatprep.subr.mxu0 0.0
    %249 = vmatpush1.xpose.msra.mxu0 0.0
    %250 = vmatprep.subr.mxu0 0.0
    %251 = vmatpush1.xpose.msra.mxu0 0.0
    %252 = vmatprep.subr.mxu0 0.0
    %253 = vmatpush1.xpose.msra.mxu0 0.0
    %254 = vmatprep.subr.mxu0 0.0
    %255 = vmatpush1.xpose.msra.mxu0 0.0
    %256 = vmatprep.subr.mxu0 0.0
    %257 = vmatpush1.xpose.msra.mxu0 0.0
    %258 = vmatprep.subr.mxu0 0.0
    %259 = vmatpush1.xpose.msra.mxu0 0.0
    %260 = vmatprep.subr.mxu0 0.0
    %261 = vmatpush1.xpose.msra.mxu0 0.0
    %262 = vmatprep.subr.mxu0 0.0
    %263 = vmatpush1.xpose.msra.mxu0 0.0
    %264 = vmatprep.subr.mxu0 0.0
    %265 = vmatpush1.xpose.msra.mxu0 0.0
    %266 = vmatprep.subr.mxu0 0.0
    %267 = vmatpush1.xpose.msra.mxu0 0.0
    %268 = vmatprep.subr.mxu0 0.0
    %269 = vmatpush1.xpose.msra.mxu0 0.0
    %270 = vmatprep.subr.mxu0 0.0
    %271 = vmatpush1.xpose.msra.mxu0 0.0
    %272 = vmatprep.subr.mxu0 0.0
    %273 = vmatpush1.xpose.msra.mxu0 0.0
    %274 = vmatprep.subr.mxu0 0.0
    %275 = vmatpush1.xpose.msra.mxu0 0.0
    %276 = vmatprep.subr.mxu0 0.0
    %277 = vmatpush1.xpose.msra.mxu0 0.0
    %278 = vmatprep.mubr.f32.mxu0 0.0
    %279 = vmatmul.mubr.f32.gmra.mrb[0].mxu0 %v208
    %v280 = vpop.f32.mrb[0].mxu0
    %v281 = vadd.f32 0.0, %v280
    %v282 = vpop.f32.mrb[0].mxu0
    %283 = vdwg.mxu0
    %v284 = vsel %vm206, %v281, -inf
    %285 = vmax.xlane.f32.xlu0 %v284
    %v286 = vpop.xlane.xlu0 %285
    %v287 = vsub.f32 %v281, %v286
    %v288 = vmul.f32 %v287, 1.442695
    %v289 = vpow.pop %v288
    %v290 = vsel %vm206, %v289, 0.0
    %291 = vadd.xlane.f32.xlu0 %v290
    %v292 = vpop.xlane.xlu0 %291
    %v293 = vrcp.pop %v292
    %v294 = vmul.f32 %v289, %v293
    %v295 = vadd.f32 %v294, 0.0
    %296 = vrot.lane.b32.xlu0 %v186, 64
    %v297 = vpop.permute.xlu0 %296
    %298 = vrot.lane.b32.xlu0 %v191, 64
    %v299 = vpop.permute.xlu0 %298
    %v303 = vsel %vm206, %v294, 0
    %305 = vmatprep.subr.mxu0 0.0
    %306 = vmatpush1.msra.mxu0 %v297
    %307 = vmatprep.subr.mxu0 0.0
    %308 = vmatpush1.msra.mxu0 %v299
    %309 = vmatprep.subr.mxu0 0.0
    %310 = vmatpush1.msra.mxu0 0.0
    %311 = vmatprep.subr.mxu0 0.0
    %312 = vmatpush1.msra.mxu0 0.0
    %313 = vmatprep.subr.mxu0 0.0
    %314 = vmatpush1.msra.mxu0 0.0
    %315 = vmatprep.subr.mxu0 0.0
    %316 = vmatpush1.msra.mxu0 0.0
    %317 = vmatprep.subr.mxu0 0.0
    %318 = vmatpush1.msra.mxu0 0.0
    %319 = vmatprep.subr.mxu0 0.0
    %320 = vmatpush1.msra.mxu0 0.0
    %321 = vmatprep.subr.mxu0 0.0
    %322 = vmatpush1.msra.mxu0 0.0
    %323 = vmatprep.subr.mxu0 0.0
    %324 = vmatpush1.msra.mxu0 0.0
    %325 = vmatprep.subr.mxu0 0.0
    %326 = vmatpush1.msra.mxu0 0.0
    %327 = vmatprep.subr.mxu0 0.0
    %328 = vmatpush1.msra.mxu0 0.0
    %329 = vmatprep.subr.mxu0 0.0
    %330 = vmatpush1.msra.mxu0 0.0
    %331 = vmatprep.subr.mxu0 0.0
    %332 = vmatpush1.msra.mxu0 0.0
    %333 = vmatprep.subr.mxu0 0.0
    %334 = vmatpush1.msra.mxu0 0.0
    %335 = vmatprep.subr.mxu0 0.0
    %336 = vmatpush1.msra.mxu0 0.0
    %337 = vmatprep.subr.mxu0 0.0
    %338 = vmatpush1.msra.mxu0 0.0
    %339 = vmatprep.subr.mxu0 0.0
    %340 = vmatpush1.msra.mxu0 0.0
    %341 = vmatprep.subr.mxu0 0.0
    %342 = vmatpush1.msra.mxu0 0.0
    %343 = vmatprep.subr.mxu0 0.0
    %344 = vmatpush1.msra.mxu0 0.0
    %345 = vmatprep.subr.mxu0 0.0
    %346 = vmatpush1.msra.mxu0 0.0
    %347 = vmatprep.subr.mxu0 0.0
    %348 = vmatpush1.msra.mxu0 0.0
    %349 = vmatprep.subr.mxu0 0.0
    %350 = vmatpush1.msra.mxu0 0.0
    %351 = vmatprep.subr.mxu0 0.0
    %352 = vmatpush1.msra.mxu0 0.0
    %353 = vmatprep.subr.mxu0 0.0
    %354 = vmatpush1.msra.mxu0 0.0
    %355 = vmatprep.subr.mxu0 0.0
    %356 = vmatpush1.msra.mxu0 0.0
    %357 = vmatprep.subr.mxu0 0.0
    %358 = vmatpush1.msra.mxu0 0.0
    %359 = vmatprep.subr.mxu0 0.0
    %360 = vmatpush1.msra.mxu0 0.0
    %361 = vmatprep.subr.mxu0 0.0
    %362 = vmatpush1.msra.mxu0 0.0
    %363 = vmatprep.subr.mxu0 0.0
    %364 = vmatpush1.msra.mxu0 0.0
    %365 = vmatprep.subr.mxu0 0.0
    %366 = vmatpush1.msra.mxu0 0.0
    %367 = vmatprep.subr.mxu0 0.0
    %368 = vmatpush1.msra.mxu0 0.0
    %369 = vmatprep.mubr.f32.mxu0 0.0
    %370 = vmatmul.mubr.f32.gmra.mrb[0].mxu0 %v303
    %v371 = vpop.f32.mrb[0].mxu0
    %v372 = vadd.f32 0.0, %v371
    %v373 = vpop.f32.mrb[0].mxu0
    %374 = vdwg.mxu0
    %375 = vrot.lane.b32.xlu0 %v181, 112
    %v376 = vpop.permute.xlu0 %375
    %377 = vrot.lane.b32.xlu0 %v186, 80
    %v378 = vpop.permute.xlu0 %377
    %379 = vrot.lane.b32.xlu0 %v191, 80
    %v380 = vpop.permute.xlu0 %379
    %v381 = vsel %vm206, %v376, 0
    %v383 = vsel %vm206, %v378, 0
    %v385 = vsel %vm206, %v380, 0
    %387 = vmatprep.subr.mxu0 0.0
    %388 = vmatpush1.xpose.msra.mxu0 %v383
    %389 = vmatprep.subr.mxu0 0.0
    %390 = vmatpush1.xpose.msra.mxu0 %v385
    %391 = vmatprep.subr.mxu0 0.0
    %392 = vmatpush1.xpose.msra.mxu0 0.0
    %393 = vmatprep.subr.mxu0 0.0
    %394 = vmatpush1.xpose.msra.mxu0 0.0
    %395 = vmatprep.subr.mxu0 0.0
    %396 = vmatpush1.xpose.msra.mxu0 0.0
    %397 = vmatprep.subr.mxu0 0.0
    %398 = vmatpush1.xpose.msra.mxu0 0.0
    %399 = vmatprep.subr.mxu0 0.0
    %400 = vmatpush1.xpose.msra.mxu0 0.0
    %401 = vmatprep.subr.mxu0 0.0
    %402 = vmatpush1.xpose.msra.mxu0 0.0
    %403 = vmatprep.subr.mxu0 0.0
    %404 = vmatpush1.xpose.msra.mxu0 0.0
    %405 = vmatprep.subr.mxu0 0.0
    %406 = vmatpush1.xpose.msra.mxu0 0.0
    %407 = vmatprep.subr.mxu0 0.0
    %408 = vmatpush1.xpose.msra.mxu0 0.0
    %409 = vmatprep.subr.mxu0 0.0
    %410 = vmatpush1.xpose.msra.mxu0 0.0
    %411 = vmatprep.subr.mxu0 0.0
    %412 = vmatpush1.xpose.msra.mxu0 0.0
    %413 = vmatprep.subr.mxu0 0.0
    %414 = vmatpush1.xpose.msra.mxu0 0.0
    %415 = vmatprep.subr.mxu0 0.0
    %416 = vmatpush1.xpose.msra.mxu0 0.0
    %417 = vmatprep.subr.mxu0 0.0
    %418 = vmatpush1.xpose.msra.mxu0 0.0
    %419 = vmatprep.subr.mxu0 0.0
    %420 = vmatpush1.xpose.msra.mxu0 0.0
    %421 = vmatprep.subr.mxu0 0.0
    %422 = vmatpush1.xpose.msra.mxu0 0.0
    %423 = vmatprep.subr.mxu0 0.0
    %424 = vmatpush1.xpose.msra.mxu0 0.0
    %425 = vmatprep.subr.mxu0 0.0
    %426 = vmatpush1.xpose.msra.mxu0 0.0
    %427 = vmatprep.subr.mxu0 0.0
    %428 = vmatpush1.xpose.msra.mxu0 0.0
    %429 = vmatprep.subr.mxu0 0.0
    %430 = vmatpush1.xpose.msra.mxu0 0.0
    %431 = vmatprep.subr.mxu0 0.0
    %432 = vmatpush1.xpose.msra.mxu0 0.0
    %433 = vmatprep.subr.mxu0 0.0
    %434 = vmatpush1.xpose.msra.mxu0 0.0
    %435 = vmatprep.subr.mxu0 0.0
    %436 = vmatpush1.xpose.msra.mxu0 0.0
    %437 = vmatprep.subr.mxu0 0.0
    %438 = vmatpush1.xpose.msra.mxu0 0.0
    %439 = vmatprep.subr.mxu0 0.0
    %440 = vmatpush1.xpose.msra.mxu0 0.0
    %441 = vmatprep.subr.mxu0 0.0
    %442 = vmatpush1.xpose.msra.mxu0 0.0
    %443 = vmatprep.subr.mxu0 0.0
    %444 = vmatpush1.xpose.msra.mxu0 0.0
    %445 = vmatprep.subr.mxu0 0.0
    %446 = vmatpush1.xpose.msra.mxu0 0.0
    %447 = vmatprep.subr.mxu0 0.0
    %448 = vmatpush1.xpose.msra.mxu0 0.0
    %449 = vmatprep.subr.mxu0 0.0
    %450 = vmatpush1.xpose.msra.mxu0 0.0
    %451 = vmatprep.mubr.f32.mxu0 0.0
    %452 = vmatmul.mubr.f32.gmra.mrb[0].mxu0 %v381
    %v453 = vpop.f32.mrb[0].mxu0
    %v454 = vadd.f32 0.0, %v453
    %v455 = vpop.f32.mrb[0].mxu0
    %456 = vdwg.mxu0
    %v457 = vsel %vm206, %v454, -inf
    %458 = vmax.xlane.f32.xlu0 %v457
    %v459 = vpop.xlane.xlu0 %458
    %v460 = vsub.f32 %v454, %v459
    %v461 = vmul.f32 %v460, 1.442695
    %v462 = vpow.pop %v461
    %v463 = vsel %vm206, %v462, 0.0
    %464 = vadd.xlane.f32.xlu0 %v463
    %v465 = vpop.xlane.xlu0 %464
    %v466 = vrcp.pop %v465
    %v467 = vmul.f32 %v462, %v466
    %v468 = vadd.f32 %v295, %v467
    %469 = vrot.lane.b32.xlu0 %v186, 48
    %v470 = vpop.permute.xlu0 %469
    %471 = vrot.lane.b32.xlu0 %v191, 48
    %v472 = vpop.permute.xlu0 %471
    %v476 = vsel %vm206, %v467, 0
    %478 = vmatprep.subr.mxu0 0.0
    %479 = vmatpush1.msra.mxu0 %v470
    %480 = vmatprep.subr.mxu0 0.0
    %481 = vmatpush1.msra.mxu0 %v472
    %482 = vmatprep.subr.mxu0 0.0
    %483 = vmatpush1.msra.mxu0 0.0
    %484 = vmatprep.subr.mxu0 0.0
    %485 = vmatpush1.msra.mxu0 0.0
    %486 = vmatprep.subr.mxu0 0.0
    %487 = vmatpush1.msra.mxu0 0.0
    %488 = vmatprep.subr.mxu0 0.0
    %489 = vmatpush1.msra.mxu0 0.0
    %490 = vmatprep.subr.mxu0 0.0
    %491 = vmatpush1.msra.mxu0 0.0
    %492 = vmatprep.subr.mxu0 0.0
    %493 = vmatpush1.msra.mxu0 0.0
    %494 = vmatprep.subr.mxu0 0.0
    %495 = vmatpush1.msra.mxu0 0.0
    %496 = vmatprep.subr.mxu0 0.0
    %497 = vmatpush1.msra.mxu0 0.0
    %498 = vmatprep.subr.mxu0 0.0
    %499 = vmatpush1.msra.mxu0 0.0
    %500 = vmatprep.subr.mxu0 0.0
    %501 = vmatpush1.msra.mxu0 0.0
    %502 = vmatprep.subr.mxu0 0.0
    %503 = vmatpush1.msra.mxu0 0.0
    %504 = vmatprep.subr.mxu0 0.0
    %505 = vmatpush1.msra.mxu0 0.0
    %506 = vmatprep.subr.mxu0 0.0
    %507 = vmatpush1.msra.mxu0 0.0
    %508 = vmatprep.subr.mxu0 0.0
    %509 = vmatpush1.msra.mxu0 0.0
    %510 = vmatprep.subr.mxu0 0.0
    %511 = vmatpush1.msra.mxu0 0.0
    %512 = vmatprep.subr.mxu0 0.0
    %513 = vmatpush1.msra.mxu0 0.0
    %514 = vmatprep.subr.mxu0 0.0
    %515 = vmatpush1.msra.mxu0 0.0
    %516 = vmatprep.subr.mxu0 0.0
    %517 = vmatpush1.msra.mxu0 0.0
    %518 = vmatprep.subr.mxu0 0.0
    %519 = vmatpush1.msra.mxu0 0.0
    %520 = vmatprep.subr.mxu0 0.0
    %521 = vmatpush1.msra.mxu0 0.0
    %522 = vmatprep.subr.mxu0 0.0
    %523 = vmatpush1.msra.mxu0 0.0
    %524 = vmatprep.subr.mxu0 0.0
    %525 = vmatpush1.msra.mxu0 0.0
    %526 = vmatprep.subr.mxu0 0.0
    %527 = vmatpush1.msra.mxu0 0.0
    %528 = vmatprep.subr.mxu0 0.0
    %529 = vmatpush1.msra.mxu0 0.0
    %530 = vmatprep.subr.mxu0 0.0
    %531 = vmatpush1.msra.mxu0 0.0
    %532 = vmatprep.subr.mxu0 0.0
    %533 = vmatpush1.msra.mxu0 0.0
    %534 = vmatprep.subr.mxu0 0.0
    %535 = vmatpush1.msra.mxu0 0.0
    %536 = vmatprep.subr.mxu0 0.0
    %537 = vmatpush1.msra.mxu0 0.0
    %538 = vmatprep.subr.mxu0 0.0
    %539 = vmatpush1.msra.mxu0 0.0
    %540 = vmatprep.subr.mxu0 0.0
    %541 = vmatpush1.msra.mxu0 0.0
    %542 = vmatprep.mubr.f32.mxu0 0.0
    %543 = vmatmul.mubr.f32.gmra.mrb[0].mxu0 %v476
    %v544 = vpop.f32.mrb[0].mxu0
    %v545 = vadd.f32 0.0, %v544
    %v546 = vpop.f32.mrb[0].mxu0
    %547 = vdwg.mxu0
    %549 = vrot.lane.b32.xlu0 %v545, 16
    %v550 = vpop.permute.xlu0 %549
    %v552 = vsel %vm206, %v372, %v550
    %v553 = vmul.f32 %v468, 0.5
    %555 = vrot.lane.b32.xlu0 %v196, 32
    %v556 = vpop.permute.xlu0 %555
    %v557 = vsel %vm206, %v556, 0
    %v560 = vsel %vm206, %v198, 0
    %562 = vmatprep.subr.mxu0 0.0
    %563 = vmatpush1.xpose.msra.mxu0 %v560
    %564 = vmatprep.subr.mxu0 0.0
    %565 = vmatpush1.xpose.msra.mxu0 0.0
    %566 = vmatprep.subr.mxu0 0.0
    %567 = vmatpush1.xpose.msra.mxu0 0.0
    %568 = vmatprep.subr.mxu0 0.0
    %569 = vmatpush1.xpose.msra.mxu0 0.0
    %570 = vmatprep.subr.mxu0 0.0
    %571 = vmatpush1.xpose.msra.mxu0 0.0
    %572 = vmatprep.subr.mxu0 0.0
    %573 = vmatpush1.xpose.msra.mxu0 0.0
    %574 = vmatprep.subr.mxu0 0.0
    %575 = vmatpush1.xpose.msra.mxu0 0.0
    %576 = vmatprep.subr.mxu0 0.0
    %577 = vmatpush1.xpose.msra.mxu0 0.0
    %578 = vmatprep.subr.mxu0 0.0
    %579 = vmatpush1.xpose.msra.mxu0 0.0
    %580 = vmatprep.subr.mxu0 0.0
    %581 = vmatpush1.xpose.msra.mxu0 0.0
    %582 = vmatprep.subr.mxu0 0.0
    %583 = vmatpush1.xpose.msra.mxu0 0.0
    %584 = vmatprep.subr.mxu0 0.0
    %585 = vmatpush1.xpose.msra.mxu0 0.0
    %586 = vmatprep.subr.mxu0 0.0
    %587 = vmatpush1.xpose.msra.mxu0 0.0
    %588 = vmatprep.subr.mxu0 0.0
    %589 = vmatpush1.xpose.msra.mxu0 0.0
    %590 = vmatprep.subr.mxu0 0.0
    %591 = vmatpush1.xpose.msra.mxu0 0.0
    %592 = vmatprep.subr.mxu0 0.0
    %593 = vmatpush1.xpose.msra.mxu0 0.0
    %594 = vmatprep.subr.mxu0 0.0
    %595 = vmatpush1.xpose.msra.mxu0 0.0
    %596 = vmatprep.subr.mxu0 0.0
    %597 = vmatpush1.xpose.msra.mxu0 0.0
    %598 = vmatprep.subr.mxu0 0.0
    %599 = vmatpush1.xpose.msra.mxu0 0.0
    %600 = vmatprep.subr.mxu0 0.0
    %601 = vmatpush1.xpose.msra.mxu0 0.0
    %602 = vmatprep.subr.mxu0 0.0
    %603 = vmatpush1.xpose.msra.mxu0 0.0
    %604 = vmatprep.subr.mxu0 0.0
    %605 = vmatpush1.xpose.msra.mxu0 0.0
    %606 = vmatprep.subr.mxu0 0.0
    %607 = vmatpush1.xpose.msra.mxu0 0.0
    %608 = vmatprep.subr.mxu0 0.0
    %609 = vmatpush1.xpose.msra.mxu0 0.0
    %610 = vmatprep.subr.mxu0 0.0
    %611 = vmatpush1.xpose.msra.mxu0 0.0
    %612 = vmatprep.subr.mxu0 0.0
    %613 = vmatpush1.xpose.msra.mxu0 0.0
    %614 = vmatprep.subr.mxu0 0.0
    %615 = vmatpush1.xpose.msra.mxu0 0.0
    %616 = vmatprep.subr.mxu0 0.0
    %617 = vmatpush1.xpose.msra.mxu0 0.0
    %618 = vmatprep.subr.mxu0 0.0
    %619 = vmatpush1.xpose.msra.mxu0 0.0
    %620 = vmatprep.subr.mxu0 0.0
    %621 = vmatpush1.xpose.msra.mxu0 0.0
    %622 = vmatprep.subr.mxu0 0.0
    %623 = vmatpush1.xpose.msra.mxu0 0.0
    %624 = vmatprep.subr.mxu0 0.0
    %625 = vmatpush1.xpose.msra.mxu0 0.0
    %626 = vmatprep.mubr.f32.mxu0 0.0
    %627 = vmatmul.mubr.f32.gmra.mrb[0].mxu0 %v557
    %v628 = vpop.f32.mrb[0].mxu0
    %v629 = vadd.f32 0.0, %v628
    %v630 = vpop.f32.mrb[0].mxu0
    %631 = vdwg.mxu0
    %vm632 = vcmask 64512
    %v633 = vsel %vm632, %v629, -inf
    %634 = vmax.xlane.f32.xlu0 %v633
    %v635 = vpop.xlane.xlu0 %634
    %v636 = vsub.f32 %v629, %v635
    %v637 = vmul.f32 %v636, 1.442695
    %v638 = vpow.pop %v637
    %v639 = vsel %vm632, %v638, 0.0
    %640 = vadd.xlane.f32.xlu0 %v639
    %v641 = vpop.xlane.xlu0 %640
    %v642 = vrcp.pop %v641
    %v643 = vmul.f32 %v638, %v642
    %v644 = vadd.f32 %v643, 0.0
    %645 = vrot.lane.b32.xlu0 %v198, 96
    %v646 = vpop.permute.xlu0 %645
    %v649 = vsel %vm632, %v643, 0
    %651 = vmatprep.subr.mxu0 0.0
    %652 = vmatpush1.msra.mxu0 %v646
    %653 = vmatprep.subr.mxu0 0.0
    %654 = vmatpush1.msra.mxu0 0.0
    %655 = vmatprep.subr.mxu0 0.0
    %656 = vmatpush1.msra.mxu0 0.0
    %657 = vmatprep.subr.mxu0 0.0
    %658 = vmatpush1.msra.mxu0 0.0
    %659 = vmatprep.subr.mxu0 0.0
    %660 = vmatpush1.msra.mxu0 0.0
    %661 = vmatprep.subr.mxu0 0.0
    %662 = vmatpush1.msra.mxu0 0.0
    %663 = vmatprep.subr.mxu0 0.0
    %664 = vmatpush1.msra.mxu0 0.0
    %665 = vmatprep.subr.mxu0 0.0
    %666 = vmatpush1.msra.mxu0 0.0
    %667 = vmatprep.subr.mxu0 0.0
    %668 = vmatpush1.msra.mxu0 0.0
    %669 = vmatprep.subr.mxu0 0.0
    %670 = vmatpush1.msra.mxu0 0.0
    %671 = vmatprep.subr.mxu0 0.0
    %672 = vmatpush1.msra.mxu0 0.0
    %673 = vmatprep.subr.mxu0 0.0
    %674 = vmatpush1.msra.mxu0 0.0
    %675 = vmatprep.subr.mxu0 0.0
    %676 = vmatpush1.msra.mxu0 0.0
    %677 = vmatprep.subr.mxu0 0.0
    %678 = vmatpush1.msra.mxu0 0.0
    %679 = vmatprep.subr.mxu0 0.0
    %680 = vmatpush1.msra.mxu0 0.0
    %681 = vmatprep.subr.mxu0 0.0
    %682 = vmatpush1.msra.mxu0 0.0
    %683 = vmatprep.subr.mxu0 0.0
    %684 = vmatpush1.msra.mxu0 0.0
    %685 = vmatprep.subr.mxu0 0.0
    %686 = vmatpush1.msra.mxu0 0.0
    %687 = vmatprep.subr.mxu0 0.0
    %688 = vmatpush1.msra.mxu0 0.0
    %689 = vmatprep.subr.mxu0 0.0
    %690 = vmatpush1.msra.mxu0 0.0
    %691 = vmatprep.subr.mxu0 0.0
    %692 = vmatpush1.msra.mxu0 0.0
    %693 = vmatprep.subr.mxu0 0.0
    %694 = vmatpush1.msra.mxu0 0.0
    %695 = vmatprep.subr.mxu0 0.0
    %696 = vmatpush1.msra.mxu0 0.0
    %697 = vmatprep.subr.mxu0 0.0
    %698 = vmatpush1.msra.mxu0 0.0
    %699 = vmatprep.subr.mxu0 0.0
    %700 = vmatpush1.msra.mxu0 0.0
    %701 = vmatprep.subr.mxu0 0.0
    %702 = vmatpush1.msra.mxu0 0.0
    %703 = vmatprep.subr.mxu0 0.0
    %704 = vmatpush1.msra.mxu0 0.0
    %705 = vmatprep.subr.mxu0 0.0
    %706 = vmatpush1.msra.mxu0 0.0
    %707 = vmatprep.subr.mxu0 0.0
    %708 = vmatpush1.msra.mxu0 0.0
    %709 = vmatprep.subr.mxu0 0.0
    %710 = vmatpush1.msra.mxu0 0.0
    %711 = vmatprep.subr.mxu0 0.0
    %712 = vmatpush1.msra.mxu0 0.0
    %713 = vmatprep.subr.mxu0 0.0
    %714 = vmatpush1.msra.mxu0 0.0
    %715 = vmatprep.mubr.f32.mxu0 0.0
    %716 = vmatmul.mubr.f32.gmra.mrb[0].mxu0 %v649
    %v717 = vpop.f32.mrb[0].mxu0
    %v718 = vadd.f32 0.0, %v717
    %v719 = vpop.f32.mrb[0].mxu0
    %720 = vdwg.mxu0
    %721 = vrot.lane.b32.xlu0 %v196, 16
    %v722 = vpop.permute.xlu0 %721
    %723 = vrot.lane.b32.xlu0 %v198, 112
    %v724 = vpop.permute.xlu0 %723
    %v725 = vsel %vm206, %v722, 0
    %v727 = vsel %vm206, %v724, 0
    %729 = vmatprep.subr.mxu0 0.0
    %730 = vmatpush1.xpose.msra.mxu0 %v727
    %731 = vmatprep.subr.mxu0 0.0
    %732 = vmatpush1.xpose.msra.mxu0 0.0
    %733 = vmatprep.subr.mxu0 0.0
    %734 = vmatpush1.xpose.msra.mxu0 0.0
    %735 = vmatprep.subr.mxu0 0.0
    %736 = vmatpush1.xpose.msra.mxu0 0.0
    %737 = vmatprep.subr.mxu0 0.0
    %738 = vmatpush1.xpose.msra.mxu0 0.0
    %739 = vmatprep.subr.mxu0 0.0
    %740 = vmatpush1.xpose.msra.mxu0 0.0
    %741 = vmatprep.subr.mxu0 0.0
    %742 = vmatpush1.xpose.msra.mxu0 0.0
    %743 = vmatprep.subr.mxu0 0.0
    %744 = vmatpush1.xpose.msra.mxu0 0.0
    %745 = vmatprep.subr.mxu0 0.0
    %746 = vmatpush1.xpose.msra.mxu0 0.0
    %747 = vmatprep.subr.mxu0 0.0
    %748 = vmatpush1.xpose.msra.mxu0 0.0
    %749 = vmatprep.subr.mxu0 0.0
    %750 = vmatpush1.xpose.msra.mxu0 0.0
    %751 = vmatprep.subr.mxu0 0.0
    %752 = vmatpush1.xpose.msra.mxu0 0.0
    %753 = vmatprep.subr.mxu0 0.0
    %754 = vmatpush1.xpose.msra.mxu0 0.0
    %755 = vmatprep.subr.mxu0 0.0
    %756 = vmatpush1.xpose.msra.mxu0 0.0
    %757 = vmatprep.subr.mxu0 0.0
    %758 = vmatpush1.xpose.msra.mxu0 0.0
    %759 = vmatprep.subr.mxu0 0.0
    %760 = vmatpush1.xpose.msra.mxu0 0.0
    %761 = vmatprep.subr.mxu0 0.0
    %762 = vmatpush1.xpose.msra.mxu0 0.0
    %763 = vmatprep.subr.mxu0 0.0
    %764 = vmatpush1.xpose.msra.mxu0 0.0
    %765 = vmatprep.subr.mxu0 0.0
    %766 = vmatpush1.xpose.msra.mxu0 0.0
    %767 = vmatprep.subr.mxu0 0.0
    %768 = vmatpush1.xpose.msra.mxu0 0.0
    %769 = vmatprep.subr.mxu0 0.0
    %770 = vmatpush1.xpose.msra.mxu0 0.0
    %771 = vmatprep.subr.mxu0 0.0
    %772 = vmatpush1.xpose.msra.mxu0 0.0
    %773 = vmatprep.subr.mxu0 0.0
    %774 = vmatpush1.xpose.msra.mxu0 0.0
    %775 = vmatprep.subr.mxu0 0.0
    %776 = vmatpush1.xpose.msra.mxu0 0.0
    %777 = vmatprep.subr.mxu0 0.0
    %778 = vmatpush1.xpose.msra.mxu0 0.0
    %779 = vmatprep.subr.mxu0 0.0
    %780 = vmatpush1.xpose.msra.mxu0 0.0
    %781 = vmatprep.subr.mxu0 0.0
    %782 = vmatpush1.xpose.msra.mxu0 0.0
    %783 = vmatprep.subr.mxu0 0.0
    %784 = vmatpush1.xpose.msra.mxu0 0.0
    %785 = vmatprep.subr.mxu0 0.0
    %786 = vmatpush1.xpose.msra.mxu0 0.0
    %787 = vmatprep.subr.mxu0 0.0
    %788 = vmatpush1.xpose.msra.mxu0 0.0
    %789 = vmatprep.subr.mxu0 0.0
    %790 = vmatpush1.xpose.msra.mxu0 0.0
    %791 = vmatprep.subr.mxu0 0.0
    %792 = vmatpush1.xpose.msra.mxu0 0.0
    %793 = vmatprep.mubr.f32.mxu0 0.0
    %794 = vmatmul.mubr.f32.gmra.mrb[0].mxu0 %v725
    %v795 = vpop.f32.mrb[0].mxu0
    %v796 = vadd.f32 0.0, %v795
    %v797 = vpop.f32.mrb[0].mxu0
    %798 = vdwg.mxu0
    %v799 = vsel %vm632, %v796, -inf
    %800 = vmax.xlane.f32.xlu0 %v799
    %v801 = vpop.xlane.xlu0 %800
    %v802 = vsub.f32 %v796, %v801
    %v803 = vmul.f32 %v802, 1.442695
    %v804 = vpow.pop %v803
    %v805 = vsel %vm632, %v804, 0.0
    %806 = vadd.xlane.f32.xlu0 %v805
    %v807 = vpop.xlane.xlu0 %806
    %v808 = vrcp.pop %v807
    %v809 = vmul.f32 %v804, %v808
    %v810 = vadd.f32 %v644, %v809
    %811 = vrot.lane.b32.xlu0 %v198, 80
    %v812 = vpop.permute.xlu0 %811
    %v815 = vsel %vm632, %v809, 0
    %817 = vmatprep.subr.mxu0 0.0
    %818 = vmatpush1.msra.mxu0 %v812
    %819 = vmatprep.subr.mxu0 0.0
    %820 = vmatpush1.msra.mxu0 0.0
    %821 = vmatprep.subr.mxu0 0.0
    %822 = vmatpush1.msra.mxu0 0.0
    %823 = vmatprep.subr.mxu0 0.0
    %824 = vmatpush1.msra.mxu0 0.0
    %825 = vmatprep.subr.mxu0 0.0
    %826 = vmatpush1.msra.mxu0 0.0
    %827 = vmatprep.subr.mxu0 0.0
    %828 = vmatpush1.msra.mxu0 0.0
    %829 = vmatprep.subr.mxu0 0.0
    %830 = vmatpush1.msra.mxu0 0.0
    %831 = vmatprep.subr.mxu0 0.0
    %832 = vmatpush1.msra.mxu0 0.0
    %833 = vmatprep.subr.mxu0 0.0
    %834 = vmatpush1.msra.mxu0 0.0
    %835 = vmatprep.subr.mxu0 0.0
    %836 = vmatpush1.msra.mxu0 0.0
    %837 = vmatprep.subr.mxu0 0.0
    %838 = vmatpush1.msra.mxu0 0.0
    %839 = vmatprep.subr.mxu0 0.0
    %840 = vmatpush1.msra.mxu0 0.0
    %841 = vmatprep.subr.mxu0 0.0
    %842 = vmatpush1.msra.mxu0 0.0
    %843 = vmatprep.subr.mxu0 0.0
    %844 = vmatpush1.msra.mxu0 0.0
    %845 = vmatprep.subr.mxu0 0.0
    %846 = vmatpush1.msra.mxu0 0.0
    %847 = vmatprep.subr.mxu0 0.0
    %848 = vmatpush1.msra.mxu0 0.0
    %849 = vmatprep.subr.mxu0 0.0
    %850 = vmatpush1.msra.mxu0 0.0
    %851 = vmatprep.subr.mxu0 0.0
    %852 = vmatpush1.msra.mxu0 0.0
    %853 = vmatprep.subr.mxu0 0.0
    %854 = vmatpush1.msra.mxu0 0.0
    %855 = vmatprep.subr.mxu0 0.0
    %856 = vmatpush1.msra.mxu0 0.0
    %857 = vmatprep.subr.mxu0 0.0
    %858 = vmatpush1.msra.mxu0 0.0
    %859 = vmatprep.subr.mxu0 0.0
    %860 = vmatpush1.msra.mxu0 0.0
    %861 = vmatprep.subr.mxu0 0.0
    %862 = vmatpush1.msra.mxu0 0.0
    %863 = vmatprep.subr.mxu0 0.0
    %864 = vmatpush1.msra.mxu0 0.0
    %865 = vmatprep.subr.mxu0 0.0
    %866 = vmatpush1.msra.mxu0 0.0
    %867 = vmatprep.subr.mxu0 0.0
    %868 = vmatpush1.msra.mxu0 0.0
    %869 = vmatprep.subr.mxu0 0.0
    %870 = vmatpush1.msra.mxu0 0.0
    %871 = vmatprep.subr.mxu0 0.0
    %872 = vmatpush1.msra.mxu0 0.0
    %873 = vmatprep.subr.mxu0 0.0
    %874 = vmatpush1.msra.mxu0 0.0
    %875 = vmatprep.subr.mxu0 0.0
    %876 = vmatpush1.msra.mxu0 0.0
    %877 = vmatprep.subr.mxu0 0.0
    %878 = vmatpush1.msra.mxu0 0.0
    %879 = vmatprep.subr.mxu0 0.0
    %880 = vmatpush1.msra.mxu0 0.0
    %881 = vmatprep.mubr.f32.mxu0 0.0
    %882 = vmatmul.mubr.f32.gmra.mrb[0].mxu0 %v815
    %v883 = vpop.f32.mrb[0].mxu0
    %v884 = vadd.f32 0.0, %v883
    %v885 = vpop.f32.mrb[0].mxu0
    %886 = vdwg.mxu0
    %888 = vrot.lane.b32.xlu0 %v884, 16
    %v889 = vpop.permute.xlu0 %888
    %v891 = vsel %vm206, %v718, %v889
    %v892 = vmul.f32 %v810, 0.5
    %894 = vrot.lane.b32.xlu0 %v891, 32
    %v895 = vpop.permute.xlu0 %894
    %v897 = vsel %vm101, %v552, %v895
    %v898 = vld [vmem:[#allocation8] sm:$0xff]
    %v899 = vld [vmem:[#allocation8 + $0x8] sm:$0xff]
    %v900 = vld [vmem:[#allocation8 + $0x10] sm:$0xff]
    %v901 = vld [vmem:[#allocation8 + $0x18] sm:$0xff]
    %v902 = vld [vmem:[#allocation8 + $0x20] sm:$0xff]
    %v903 = vld [vmem:[#allocation8 + $0x28] sm:$0xff]
    %v904 = vld [vmem:[#allocation8 + $0x30] sm:$0xff]
    %v905 = vld [vmem:[#allocation8 + $0x38] sm:$0xff]
    %v906 = vld [vmem:[%s5] sm:$0x1]
    %v908 = vlaneseq
    %v909 = vshrl.u32 %v908, 7
    %v910 = vsub.s32 0, %v909
    %v911 = vrot.slane %v906, %v910
    %vm913 = vcmask 523264
    %v915 = vsel %vm913, %v897, 0
    %917 = vmatprep.subr.mxu0 0.0
    %918 = vmatpush1.msra.mxu0 %v898
    %919 = vmatprep.subr.mxu0 0.0
    %920 = vmatpush1.msra.mxu0 %v899
    %921 = vmatprep.subr.mxu0 0.0
    %922 = vmatpush1.msra.mxu0 %v900
    %923 = vmatprep.subr.mxu0 0.0
    %924 = vmatpush1.msra.mxu0 %v901
    %925 = vmatprep.subr.mxu0 0.0
    %926 = vmatpush1.msra.mxu0 %v902
    %927 = vmatprep.subr.mxu0 0.0
    %928 = vmatpush1.msra.mxu0 %v903
    %929 = vmatprep.subr.mxu0 0.0
    %930 = vmatpush1.msra.mxu0 %v904
    %931 = vmatprep.subr.mxu0 0.0
    %932 = vmatpush1.msra.mxu0 %v905
    %933 = vmatprep.subr.mxu0 0.0
    %934 = vmatpush1.msra.mxu0 0.0
    %935 = vmatprep.subr.mxu0 0.0
    %936 = vmatpush1.msra.mxu0 0.0
    %937 = vmatprep.subr.mxu0 0.0
    %938 = vmatpush1.msra.mxu0 0.0
    %939 = vmatprep.subr.mxu0 0.0
    %940 = vmatpush1.msra.mxu0 0.0
    %941 = vmatprep.subr.mxu0 0.0
    %942 = vmatpush1.msra.mxu0 0.0
    %943 = vmatprep.subr.mxu0 0.0
    %944 = vmatpush1.msra.mxu0 0.0
    %945 = vmatprep.subr.mxu0 0.0
    %946 = vmatpush1.msra.mxu0 0.0
    %947 = vmatprep.subr.mxu0 0.0
    %948 = vmatpush1.msra.mxu0 0.0
    %949 = vmatprep.subr.mxu0 0.0
    %950 = vmatpush1.msra.mxu0 0.0
    %951 = vmatprep.subr.mxu0 0.0
    %952 = vmatpush1.msra.mxu0 0.0
    %953 = vmatprep.subr.mxu0 0.0
    %954 = vmatpush1.msra.mxu0 0.0
    %955 = vmatprep.subr.mxu0 0.0
    %956 = vmatpush1.msra.mxu0 0.0
    %957 = vmatprep.subr.mxu0 0.0
    %958 = vmatpush1.msra.mxu0 0.0
    %959 = vmatprep.subr.mxu0 0.0
    %960 = vmatpush1.msra.mxu0 0.0
    %961 = vmatprep.subr.mxu0 0.0
    %962 = vmatpush1.msra.mxu0 0.0
    %963 = vmatprep.subr.mxu0 0.0
    %964 = vmatpush1.msra.mxu0 0.0
    %965 = vmatprep.subr.mxu0 0.0
    %966 = vmatpush1.msra.mxu0 0.0
    %967 = vmatprep.subr.mxu0 0.0
    %968 = vmatpush1.msra.mxu0 0.0
    %969 = vmatprep.subr.mxu0 0.0
    %970 = vmatpush1.msra.mxu0 0.0
    %971 = vmatprep.subr.mxu0 0.0
    %972 = vmatpush1.msra.mxu0 0.0
    %973 = vmatprep.subr.mxu0 0.0
    %974 = vmatpush1.msra.mxu0 0.0
    %975 = vmatprep.subr.mxu0 0.0
    %976 = vmatpush1.msra.mxu0 0.0
    %977 = vmatprep.subr.mxu0 0.0
    %978 = vmatpush1.msra.mxu0 0.0
    %979 = vmatprep.subr.mxu0 0.0
    %980 = vmatpush1.msra.mxu0 0.0
    %981 = vmatprep.mubr.f32.mxu0 0.0
    %982 = vmatmul.mubr.f32.gmra.mrb[0].mxu0 %v915
    %v983 = vpop.f32.mrb[0].mxu0
    %v984 = vadd.f32 %v911, %v983
    %v985 = vpop.f32.mrb[0].mxu0
    %986 = vdwg.mxu0
    %988 = vrot.lane.b32.xlu0 %v984, 96
    %v989 = vpop.permute.xlu0 %988
    %s990 = scalar_lea.vmem [#allocation7], 64
    %v991 = vld [vmem:[%s990] sm:$0xff]
    %v992 = vld [vmem:[%s990 + $0x8] sm:$0xff]
    %v993 = vld [vmem:[%s990 + $0x10] sm:$0xff]
    %v994 = vld [vmem:[%s990 + $0x18] sm:$0xff]
    %v995 = vld [vmem:[%s990 + $0x20] sm:$0xff]
    %v996 = vld [vmem:[%s990 + $0x28] sm:$0xff]
    %v997 = vld [vmem:[%s990 + $0x30] sm:$0xff]
    %v998 = vld [vmem:[%s990 + $0x38] sm:$0xff]
    %s999 = scalar_lea.vmem %s3, 2
    %v1000 = vld [vmem:[%s999] sm:$0x3]
    %v1002 = vlaneseq
    %v1003 = vshrl.u32 %v1002, 7
    %v1004 = vsub.s32 0, %v1003
    %v1005 = vrot.slane %v1000, %v1004
    %v1006 = vlaneseq
    %v1007 = vshrl.u32 %v1006, 7
    %v1008 = vsub.s32 1, %v1007
    %v1009 = vrot.slane %v1000, %v1008
    %v1012 = vsel %vm101, %v984, 0
    %v1014 = vsel %vm101, %v989, 0
    %1016 = vmatprep.subr.mxu0 %v992
    %1017 = vmatpush1.msra.mxu0 %v991
    %1018 = vmatprep.subr.mxu0 %v994
    %1019 = vmatpush1.msra.mxu0 %v993
    %1020 = vmatprep.subr.mxu0 %v996
    %1021 = vmatpush1.msra.mxu0 %v995
    %1022 = vmatprep.subr.mxu0 %v998
    %1023 = vmatpush1.msra.mxu0 %v997
    %1024 = vmatprep.subr.mxu0 0.0
    %1025 = vmatpush1.msra.mxu0 0.0
    %1026 = vmatprep.subr.mxu0 0.0
    %1027 = vmatpush1.msra.mxu0 0.0
    %1028 = vmatprep.subr.mxu0 0.0
    %1029 = vmatpush1.msra.mxu0 0.0
    %1030 = vmatprep.subr.mxu0 0.0
    %1031 = vmatpush1.msra.mxu0 0.0
    %1032 = vmatprep.subr.mxu0 0.0
    %1033 = vmatpush1.msra.mxu0 0.0
    %1034 = vmatprep.subr.mxu0 0.0
    %1035 = vmatpush1.msra.mxu0 0.0
    %1036 = vmatprep.subr.mxu0 0.0
    %1037 = vmatpush1.msra.mxu0 0.0
    %1038 = vmatprep.subr.mxu0 0.0
    %1039 = vmatpush1.msra.mxu0 0.0
    %1040 = vmatprep.subr.mxu0 0.0
    %1041 = vmatpush1.msra.mxu0 0.0
    %1042 = vmatprep.subr.mxu0 0.0
    %1043 = vmatpush1.msra.mxu0 0.0
    %1044 = vmatprep.subr.mxu0 0.0
    %1045 = vmatpush1.msra.mxu0 0.0
    %1046 = vmatprep.subr.mxu0 0.0
    %1047 = vmatpush1.msra.mxu0 0.0
    %1048 = vmatprep.subr.mxu0 0.0
    %1049 = vmatpush1.msra.mxu0 0.0
    %1050 = vmatprep.subr.mxu0 0.0
    %1051 = vmatpush1.msra.mxu0 0.0
    %1052 = vmatprep.subr.mxu0 0.0
    %1053 = vmatpush1.msra.mxu0 0.0
    %1054 = vmatprep.subr.mxu0 0.0
    %1055 = vmatpush1.msra.mxu0 0.0
    %1056 = vmatprep.subr.mxu0 0.0
    %1057 = vmatpush1.msra.mxu0 0.0
    %1058 = vmatprep.subr.mxu0 0.0
    %1059 = vmatpush1.msra.mxu0 0.0
    %1060 = vmatprep.subr.mxu0 0.0
    %1061 = vmatpush1.msra.mxu0 0.0
    %1062 = vmatprep.subr.mxu0 0.0
    %1063 = vmatpush1.msra.mxu0 0.0
    %1064 = vmatprep.subr.mxu0 0.0
    %1065 = vmatpush1.msra.mxu0 0.0
    %1066 = vmatprep.subr.mxu0 0.0
    %1067 = vmatpush1.msra.mxu0 0.0
    %1068 = vmatprep.subr.mxu0 0.0
    %1069 = vmatpush1.msra.mxu0 0.0
    %1070 = vmatprep.subr.mxu0 0.0
    %1071 = vmatpush1.msra.mxu0 0.0
    %1072 = vmatprep.subr.mxu0 0.0
    %1073 = vmatpush1.msra.mxu0 0.0
    %1074 = vmatprep.subr.mxu0 0.0
    %1075 = vmatpush1.msra.mxu0 0.0
    %1076 = vmatprep.subr.mxu0 0.0
    %1077 = vmatpush1.msra.mxu0 0.0
    %1078 = vmatprep.subr.mxu0 0.0
    %1079 = vmatpush1.msra.mxu0 0.0
    %1080 = vmatprep.mubr.f32.mxu0 0.0
    %1081 = vmatmul.mubr.f32.gmra.mrb[0].mxu0 %v1012
    %v1082 = vpop.f32.mrb[0].mxu0
    %v1083 = vadd.f32 %v1005, %v1082
    %v1084 = vpop.f32.mrb[0].mxu0
    %v1085 = vadd.f32 %v1009, %v1084
    %1086 = vmatprep.mubr.f32.mxu0 0.0
    %1087 = vmatmul.mubr.f32.gmra.mrb[0].mxu0 %v1014
    %v1088 = vpop.f32.mrb[0].mxu0
    %v1089 = vadd.f32 %v1005, %v1088
    %v1090 = vpop.f32.mrb[0].mxu0
    %1091 = vdwg.mxu0
    %1093 = vrot.lane.b32.xlu0 %v1089, 96
    %v1094 = vpop.permute.xlu0 %1093
    %v1096 = vsel %vm206, %v1083, 0
    %v1098 = vsel %vm206, %v1094, 0
    %1100 = vmatprep.subr.mxu0 0.0
    %1101 = vmatpush1.xpose.msra.mxu0 %v1098
    %1102 = vmatprep.subr.mxu0 0.0
    %1103 = vmatpush1.xpose.msra.mxu0 0.0
    %1104 = vmatprep.subr.mxu0 0.0
    %1105 = vmatpush1.xpose.msra.mxu0 0.0
    %1106 = vmatprep.subr.mxu0 0.0
    %1107 = vmatpush1.xpose.msra.mxu0 0.0
    %1108 = vmatprep.subr.mxu0 0.0
    %1109 = vmatpush1.xpose.msra.mxu0 0.0
    %1110 = vmatprep.subr.mxu0 0.0
    %1111 = vmatpush1.xpose.msra.mxu0 0.0
    %1112 = vmatprep.subr.mxu0 0.0
    %1113 = vmatpush1.xpose.msra.mxu0 0.0
    %1114 = vmatprep.subr.mxu0 0.0
    %1115 = vmatpush1.xpose.msra.mxu0 0.0
    %1116 = vmatprep.subr.mxu0 0.0
    %1117 = vmatpush1.xpose.msra.mxu0 0.0
    %1118 = vmatprep.subr.mxu0 0.0
    %1119 = vmatpush1.xpose.msra.mxu0 0.0
    %1120 = vmatprep.subr.mxu0 0.0
    %1121 = vmatpush1.xpose.msra.mxu0 0.0
    %1122 = vmatprep.subr.mxu0 0.0
    %1123 = vmatpush1.xpose.msra.mxu0 0.0
    %1124 = vmatprep.subr.mxu0 0.0
    %1125 = vmatpush1.xpose.msra.mxu0 0.0
    %1126 = vmatprep.subr.mxu0 0.0
    %1127 = vmatpush1.xpose.msra.mxu0 0.0
    %1128 = vmatprep.subr.mxu0 0.0
    %1129 = vmatpush1.xpose.msra.mxu0 0.0
    %1130 = vmatprep.subr.mxu0 0.0
    %1131 = vmatpush1.xpose.msra.mxu0 0.0
    %1132 = vmatprep.subr.mxu0 0.0
    %1133 = vmatpush1.xpose.msra.mxu0 0.0
    %1134 = vmatprep.subr.mxu0 0.0
    %1135 = vmatpush1.xpose.msra.mxu0 0.0
    %1136 = vmatprep.subr.mxu0 0.0
    %1137 = vmatpush1.xpose.msra.mxu0 0.0
    %1138 = vmatprep.subr.mxu0 0.0
    %1139 = vmatpush1.xpose.msra.mxu0 0.0
    %1140 = vmatprep.subr.mxu0 0.0
    %1141 = vmatpush1.xpose.msra.mxu0 0.0
    %1142 = vmatprep.subr.mxu0 0.0
    %1143 = vmatpush1.xpose.msra.mxu0 0.0
    %1144 = vmatprep.subr.mxu0 0.0
    %1145 = vmatpush1.xpose.msra.mxu0 0.0
    %1146 = vmatprep.subr.mxu0 0.0
    %1147 = vmatpush1.xpose.msra.mxu0 0.0
    %1148 = vmatprep.subr.mxu0 0.0
    %1149 = vmatpush1.xpose.msra.mxu0 0.0
    %1150 = vmatprep.subr.mxu0 0.0
    %1151 = vmatpush1.xpose.msra.mxu0 0.0
    %1152 = vmatprep.subr.mxu0 0.0
    %1153 = vmatpush1.xpose.msra.mxu0 0.0
    %1154 = vmatprep.subr.mxu0 0.0
    %1155 = vmatpush1.xpose.msra.mxu0 0.0
    %1156 = vmatprep.subr.mxu0 0.0
    %1157 = vmatpush1.xpose.msra.mxu0 0.0
    %1158 = vmatprep.subr.mxu0 0.0
    %1159 = vmatpush1.xpose.msra.mxu0 0.0
    %1160 = vmatprep.subr.mxu0 0.0
    %1161 = vmatpush1.xpose.msra.mxu0 0.0
    %1162 = vmatprep.subr.mxu0 0.0
    %1163 = vmatpush1.xpose.msra.mxu0 0.0
    %1164 = vmatprep.mubr.f32.mxu0 0.0
    %1165 = vmatmul.mubr.f32.gmra.mrb[0].mxu0 %v1096
    %v1166 = vpop.f32.mrb[0].mxu0
    %v1167 = vadd.f32 0.0, %v1166
    %v1168 = vpop.f32.mrb[0].mxu0
    %1169 = vdwg.mxu0
    %v1170 = vsel %vm632, %v1167, -inf
    %1171 = vmax.xlane.f32.xlu0 %v1170
    %v1172 = vpop.xlane.xlu0 %1171
    %v1173 = vsub.f32 %v1167, %v1172
    %v1174 = vmul.f32 %v1173, 1.442695
    %v1175 = vpow.pop %v1174
    %v1176 = vsel %vm632, %v1175, 0.0
    %1177 = vadd.xlane.f32.xlu0 %v1176
    %v1178 = vpop.xlane.xlu0 %1177
    %v1179 = vrcp.pop %v1178
    %v1180 = vmul.f32 %v1175, %v1179
    %v1181 = vadd.f32 %v1180, 0.0
    %1182 = vrot.lane.b32.xlu0 %v1089, 64
    %v1183 = vpop.permute.xlu0 %1182
    %v1186 = vsel %vm632, %v1180, 0
    %1188 = vmatprep.subr.mxu0 0.0
    %1189 = vmatpush1.msra.mxu0 %v1183
    %1190 = vmatprep.subr.mxu0 0.0
    %1191 = vmatpush1.msra.mxu0 0.0
    %1192 = vmatprep.subr.mxu0 0.0
    %1193 = vmatpush1.msra.mxu0 0.0
    %1194 = vmatprep.subr.mxu0 0.0
    %1195 = vmatpush1.msra.mxu0 0.0
    %1196 = vmatprep.subr.mxu0 0.0
    %1197 = vmatpush1.msra.mxu0 0.0
    %1198 = vmatprep.subr.mxu0 0.0
    %1199 = vmatpush1.msra.mxu0 0.0
    %1200 = vmatprep.subr.mxu0 0.0
    %1201 = vmatpush1.msra.mxu0 0.0
    %1202 = vmatprep.subr.mxu0 0.0
    %1203 = vmatpush1.msra.mxu0 0.0
    %1204 = vmatprep.subr.mxu0 0.0
    %1205 = vmatpush1.msra.mxu0 0.0
    %1206 = vmatprep.subr.mxu0 0.0
    %1207 = vmatpush1.msra.mxu0 0.0
    %1208 = vmatprep.subr.mxu0 0.0
    %1209 = vmatpush1.msra.mxu0 0.0
    %1210 = vmatprep.subr.mxu0 0.0
    %1211 = vmatpush1.msra.mxu0 0.0
    %1212 = vmatprep.subr.mxu0 0.0
    %1213 = vmatpush1.msra.mxu0 0.0
    %1214 = vmatprep.subr.mxu0 0.0
    %1215 = vmatpush1.msra.mxu0 0.0
    %1216 = vmatprep.subr.mxu0 0.0
    %1217 = vmatpush1.msra.mxu0 0.0
    %1218 = vmatprep.subr.mxu0 0.0
    %1219 = vmatpush1.msra.mxu0 0.0
    %1220 = vmatprep.subr.mxu0 0.0
    %1221 = vmatpush1.msra.mxu0 0.0
    %1222 = vmatprep.subr.mxu0 0.0
    %1223 = vmatpush1.msra.mxu0 0.0
    %1224 = vmatprep.subr.mxu0 0.0
    %1225 = vmatpush1.msra.mxu0 0.0
    %1226 = vmatprep.subr.mxu0 0.0
    %1227 = vmatpush1.msra.mxu0 0.0
    %1228 = vmatprep.subr.mxu0 0.0
    %1229 = vmatpush1.msra.mxu0 0.0
    %1230 = vmatprep.subr.mxu0 0.0
    %1231 = vmatpush1.msra.mxu0 0.0
    %1232 = vmatprep.subr.mxu0 0.0
    %1233 = vmatpush1.msra.mxu0 0.0
    %1234 = vmatprep.subr.mxu0 0.0
    %1235 = vmatpush1.msra.mxu0 0.0
    %1236 = vmatprep.subr.mxu0 0.0
    %1237 = vmatpush1.msra.mxu0 0.0
    %1238 = vmatprep.subr.mxu0 0.0
    %1239 = vmatpush1.msra.mxu0 0.0
    %1240 = vmatprep.subr.mxu0 0.0
    %1241 = vmatpush1.msra.mxu0 0.0
    %1242 = vmatprep.subr.mxu0 0.0
    %1243 = vmatpush1.msra.mxu0 0.0
    %1244 = vmatprep.subr.mxu0 0.0
    %1245 = vmatpush1.msra.mxu0 0.0
    %1246 = vmatprep.subr.mxu0 0.0
    %1247 = vmatpush1.msra.mxu0 0.0
    %1248 = vmatprep.subr.mxu0 0.0
    %1249 = vmatpush1.msra.mxu0 0.0
    %1250 = vmatprep.subr.mxu0 0.0
    %1251 = vmatpush1.msra.mxu0 0.0
    %1252 = vmatprep.mubr.f32.mxu0 0.0
    %1253 = vmatmul.mubr.f32.gmra.mrb[0].mxu0 %v1186
    %v1254 = vpop.f32.mrb[0].mxu0
    %v1255 = vadd.f32 0.0, %v1254
    %v1256 = vpop.f32.mrb[0].mxu0
    %1257 = vdwg.mxu0
    %1258 = vrot.lane.b32.xlu0 %v1083, 112
    %v1259 = vpop.permute.xlu0 %1258
    %1260 = vrot.lane.b32.xlu0 %v1089, 80
    %v1261 = vpop.permute.xlu0 %1260
    %v1262 = vsel %vm206, %v1259, 0
    %v1264 = vsel %vm206, %v1261, 0
    %1266 = vmatprep.subr.mxu0 0.0
    %1267 = vmatpush1.xpose.msra.mxu0 %v1264
    %1268 = vmatprep.subr.mxu0 0.0
    %1269 = vmatpush1.xpose.msra.mxu0 0.0
    %1270 = vmatprep.subr.mxu0 0.0
    %1271 = vmatpush1.xpose.msra.mxu0 0.0
    %1272 = vmatprep.subr.mxu0 0.0
    %1273 = vmatpush1.xpose.msra.mxu0 0.0
    %1274 = vmatprep.subr.mxu0 0.0
    %1275 = vmatpush1.xpose.msra.mxu0 0.0
    %1276 = vmatprep.subr.mxu0 0.0
    %1277 = vmatpush1.xpose.msra.mxu0 0.0
    %1278 = vmatprep.subr.mxu0 0.0
    %1279 = vmatpush1.xpose.msra.mxu0 0.0
    %1280 = vmatprep.subr.mxu0 0.0
    %1281 = vmatpush1.xpose.msra.mxu0 0.0
    %1282 = vmatprep.subr.mxu0 0.0
    %1283 = vmatpush1.xpose.msra.mxu0 0.0
    %1284 = vmatprep.subr.mxu0 0.0
    %1285 = vmatpush1.xpose.msra.mxu0 0.0
    %1286 = vmatprep.subr.mxu0 0.0
    %1287 = vmatpush1.xpose.msra.mxu0 0.0
    %1288 = vmatprep.subr.mxu0 0.0
    %1289 = vmatpush1.xpose.msra.mxu0 0.0
    %1290 = vmatprep.subr.mxu0 0.0
    %1291 = vmatpush1.xpose.msra.mxu0 0.0
    %1292 = vmatprep.subr.mxu0 0.0
    %1293 = vmatpush1.xpose.msra.mxu0 0.0
    %1294 = vmatprep.subr.mxu0 0.0
    %1295 = vmatpush1.xpose.msra.mxu0 0.0
    %1296 = vmatprep.subr.mxu0 0.0
    %1297 = vmatpush1.xpose.msra.mxu0 0.0
    %1298 = vmatprep.subr.mxu0 0.0
    %1299 = vmatpush1.xpose.msra.mxu0 0.0
    %1300 = vmatprep.subr.mxu0 0.0
    %1301 = vmatpush1.xpose.msra.mxu0 0.0
    %1302 = vmatprep.subr.mxu0 0.0
    %1303 = vmatpush1.xpose.msra.mxu0 0.0
    %1304 = vmatprep.subr.mxu0 0.0
    %1305 = vmatpush1.xpose.msra.mxu0 0.0
    %1306 = vmatprep.subr.mxu0 0.0
    %1307 = vmatpush1.xpose.msra.mxu0 0.0
    %1308 = vmatprep.subr.mxu0 0.0
    %1309 = vmatpush1.xpose.msra.mxu0 0.0
    %1310 = vmatprep.subr.mxu0 0.0
    %1311 = vmatpush1.xpose.msra.mxu0 0.0
    %1312 = vmatprep.subr.mxu0 0.0
    %1313 = vmatpush1.xpose.msra.mxu0 0.0
    %1314 = vmatprep.subr.mxu0 0.0
    %1315 = vmatpush1.xpose.msra.mxu0 0.0
    %1316 = vmatprep.subr.mxu0 0.0
    %1317 = vmatpush1.xpose.msra.mxu0 0.0
    %1318 = vmatprep.subr.mxu0 0.0
    %1319 = vmatpush1.xpose.msra.mxu0 0.0
    %1320 = vmatprep.subr.mxu0 0.0
    %1321 = vmatpush1.xpose.msra.mxu0 0.0
    %1322 = vmatprep.subr.mxu0 0.0
    %1323 = vmatpush1.xpose.msra.mxu0 0.0
    %1324 = vmatprep.subr.mxu0 0.0
    %1325 = vmatpush1.xpose.msra.mxu0 0.0
    %1326 = vmatprep.subr.mxu0 0.0
    %1327 = vmatpush1.xpose.msra.mxu0 0.0
    %1328 = vmatprep.subr.mxu0 0.0
    %1329 = vmatpush1.xpose.msra.mxu0 0.0
    %1330 = vmatprep.mubr.f32.mxu0 0.0
    %1331 = vmatmul.mubr.f32.gmra.mrb[0].mxu0 %v1262
    %v1332 = vpop.f32.mrb[0].mxu0
    %v1333 = vadd.f32 0.0, %v1332
    %v1334 = vpop.f32.mrb[0].mxu0
    %1335 = vdwg.mxu0
    %v1336 = vsel %vm632, %v1333, -inf
    %1337 = vmax.xlane.f32.xlu0 %v1336
    %v1338 = vpop.xlane.xlu0 %1337
    %v1339 = vsub.f32 %v1333, %v1338
    %v1340 = vmul.f32 %v1339, 1.442695
    %v1341 = vpow.pop %v1340
    %v1342 = vsel %vm632, %v1341, 0.0
    %1343 = vadd.xlane.f32.xlu0 %v1342
    %v1344 = vpop.xlane.xlu0 %1343
    %v1345 = vrcp.pop %v1344
    %v1346 = vmul.f32 %v1341, %v1345
    %v1347 = vadd.f32 %v1181, %v1346
    %1348 = vrot.lane.b32.xlu0 %v1089, 48
    %v1349 = vpop.permute.xlu0 %1348
    %v1352 = vsel %vm632, %v1346, 0
    %1354 = vmatprep.subr.mxu0 0.0
    %1355 = vmatpush1.msra.mxu0 %v1349
    %1356 = vmatprep.subr.mxu0 0.0
    %1357 = vmatpush1.msra.mxu0 0.0
    %1358 = vmatprep.subr.mxu0 0.0
    %1359 = vmatpush1.msra.mxu0 0.0
    %1360 = vmatprep.subr.mxu0 0.0
    %1361 = vmatpush1.msra.mxu0 0.0
    %1362 = vmatprep.subr.mxu0 0.0
    %1363 = vmatpush1.msra.mxu0 0.0
    %1364 = vmatprep.subr.mxu0 0.0
    %1365 = vmatpush1.msra.mxu0 0.0
    %1366 = vmatprep.subr.mxu0 0.0
    %1367 = vmatpush1.msra.mxu0 0.0
    %1368 = vmatprep.subr.mxu0 0.0
    %1369 = vmatpush1.msra.mxu0 0.0
    %1370 = vmatprep.subr.mxu0 0.0
    %1371 = vmatpush1.msra.mxu0 0.0
    %1372 = vmatprep.subr.mxu0 0.0
    %1373 = vmatpush1.msra.mxu0 0.0
    %1374 = vmatprep.subr.mxu0 0.0
    %1375 = vmatpush1.msra.mxu0 0.0
    %1376 = vmatprep.subr.mxu0 0.0
    %1377 = vmatpush1.msra.mxu0 0.0
    %1378 = vmatprep.subr.mxu0 0.0
    %1379 = vmatpush1.msra.mxu0 0.0
    %1380 = vmatprep.subr.mxu0 0.0
    %1381 = vmatpush1.msra.mxu0 0.0
    %1382 = vmatprep.subr.mxu0 0.0
    %1383 = vmatpush1.msra.mxu0 0.0
    %1384 = vmatprep.subr.mxu0 0.0
    %1385 = vmatpush1.msra.mxu0 0.0
    %1386 = vmatprep.subr.mxu0 0.0
    %1387 = vmatpush1.msra.mxu0 0.0
    %1388 = vmatprep.subr.mxu0 0.0
    %1389 = vmatpush1.msra.mxu0 0.0
    %1390 = vmatprep.subr.mxu0 0.0
    %1391 = vmatpush1.msra.mxu0 0.0
    %1392 = vmatprep.subr.mxu0 0.0
    %1393 = vmatpush1.msra.mxu0 0.0
    %1394 = vmatprep.subr.mxu0 0.0
    %1395 = vmatpush1.msra.mxu0 0.0
    %1396 = vmatprep.subr.mxu0 0.0
    %1397 = vmatpush1.msra.mxu0 0.0
    %1398 = vmatprep.subr.mxu0 0.0
    %1399 = vmatpush1.msra.mxu0 0.0
    %1400 = vmatprep.subr.mxu0 0.0
    %1401 = vmatpush1.msra.mxu0 0.0
    %1402 = vmatprep.subr.mxu0 0.0
    %1403 = vmatpush1.msra.mxu0 0.0
    %1404 = vmatprep.subr.mxu0 0.0
    %1405 = vmatpush1.msra.mxu0 0.0
    %1406 = vmatprep.subr.mxu0 0.0
    %1407 = vmatpush1.msra.mxu0 0.0
    %1408 = vmatprep.subr.mxu0 0.0
    %1409 = vmatpush1.msra.mxu0 0.0
    %1410 = vmatprep.subr.mxu0 0.0
    %1411 = vmatpush1.msra.mxu0 0.0
    %1412 = vmatprep.subr.mxu0 0.0
    %1413 = vmatpush1.msra.mxu0 0.0
    %1414 = vmatprep.subr.mxu0 0.0
    %1415 = vmatpush1.msra.mxu0 0.0
    %1416 = vmatprep.subr.mxu0 0.0
    %1417 = vmatpush1.msra.mxu0 0.0
    %1418 = vmatprep.mubr.f32.mxu0 0.0
    %1419 = vmatmul.mubr.f32.gmra.mrb[0].mxu0 %v1352
    %v1420 = vpop.f32.mrb[0].mxu0
    %v1421 = vadd.f32 0.0, %v1420
    %v1422 = vpop.f32.mrb[0].mxu0
    %1423 = vdwg.mxu0
    %1425 = vrot.lane.b32.xlu0 %v1421, 16
    %v1426 = vpop.permute.xlu0 %1425
    %v1428 = vsel %vm206, %v1255, %v1426
    %v1429 = vmul.f32 %v1347, 0.5
    %1430 = vrot.lane.b32.xlu0 %v1089, 32
    %v1431 = vpop.permute.xlu0 %1430
    %v1432 = vsel %vm206, %v1431, 0
    %v1435 = vsel %vm206, %v1085, 0
    %1437 = vmatprep.subr.mxu0 0.0
    %1438 = vmatpush1.xpose.msra.mxu0 %v1435
    %1439 = vmatprep.subr.mxu0 0.0
    %1440 = vmatpush1.xpose.msra.mxu0 0.0
    %1441 = vmatprep.subr.mxu0 0.0
    %1442 = vmatpush1.xpose.msra.mxu0 0.0
    %1443 = vmatprep.subr.mxu0 0.0
    %1444 = vmatpush1.xpose.msra.mxu0 0.0
    %1445 = vmatprep.subr.mxu0 0.0
    %1446 = vmatpush1.xpose.msra.mxu0 0.0
    %1447 = vmatprep.subr.mxu0 0.0
    %1448 = vmatpush1.xpose.msra.mxu0 0.0
    %1449 = vmatprep.subr.mxu0 0.0
    %1450 = vmatpush1.xpose.msra.mxu0 0.0
    %1451 = vmatprep.subr.mxu0 0.0
    %1452 = vmatpush1.xpose.msra.mxu0 0.0
    %1453 = vmatprep.subr.mxu0 0.0
    %1454 = vmatpush1.xpose.msra.mxu0 0.0
    %1455 = vmatprep.subr.mxu0 0.0
    %1456 = vmatpush1.xpose.msra.mxu0 0.0
    %1457 = vmatprep.subr.mxu0 0.0
    %1458 = vmatpush1.xpose.msra.mxu0 0.0
    %1459 = vmatprep.subr.mxu0 0.0
    %1460 = vmatpush1.xpose.msra.mxu0 0.0
    %1461 = vmatprep.subr.mxu0 0.0
    %1462 = vmatpush1.xpose.msra.mxu0 0.0
    %1463 = vmatprep.subr.mxu0 0.0
    %1464 = vmatpush1.xpose.msra.mxu0 0.0
    %1465 = vmatprep.subr.mxu0 0.0
    %1466 = vmatpush1.xpose.msra.mxu0 0.0
    %1467 = vmatprep.subr.mxu0 0.0
    %1468 = vmatpush1.xpose.msra.mxu0 0.0
    %1469 = vmatprep.subr.mxu0 0.0
    %1470 = vmatpush1.xpose.msra.mxu0 0.0
    %1471 = vmatprep.subr.mxu0 0.0
    %1472 = vmatpush1.xpose.msra.mxu0 0.0
    %1473 = vmatprep.subr.mxu0 0.0
    %1474 = vmatpush1.xpose.msra.mxu0 0.0
    %1475 = vmatprep.subr.mxu0 0.0
    %1476 = vmatpush1.xpose.msra.mxu0 0.0
    %1477 = vmatprep.subr.mxu0 0.0
    %1478 = vmatpush1.xpose.msra.mxu0 0.0
    %1479 = vmatprep.subr.mxu0 0.0
    %1480 = vmatpush1.xpose.msra.mxu0 0.0
    %1481 = vmatprep.subr.mxu0 0.0
    %1482 = vmatpush1.xpose.msra.mxu0 0.0
    %1483 = vmatprep.subr.mxu0 0.0
    %1484 = vmatpush1.xpose.msra.mxu0 0.0
    %1485 = vmatprep.subr.mxu0 0.0
    %1486 = vmatpush1.xpose.msra.mxu0 0.0
    %1487 = vmatprep.subr.mxu0 0.0
    %1488 = vmatpush1.xpose.msra.mxu0 0.0
    %1489 = vmatprep.subr.mxu0 0.0
    %1490 = vmatpush1.xpose.msra.mxu0 0.0
    %1491 = vmatprep.subr.mxu0 0.0
    %1492 = vmatpush1.xpose.msra.mxu0 0.0
    %1493 = vmatprep.subr.mxu0 0.0
    %1494 = vmatpush1.xpose.msra.mxu0 0.0
    %1495 = vmatprep.subr.mxu0 0.0
    %1496 = vmatpush1.xpose.msra.mxu0 0.0
    %1497 = vmatprep.subr.mxu0 0.0
    %1498 = vmatpush1.xpose.msra.mxu0 0.0
    %1499 = vmatprep.subr.mxu0 0.0
    %1500 = vmatpush1.xpose.msra.mxu0 0.0
    %1501 = vmatprep.mubr.f32.mxu0 0.0
    %1502 = vmatmul.mubr.f32.gmra.mrb[0].mxu0 %v1432
    %v1503 = vpop.f32.mrb[0].mxu0
    %v1504 = vadd.f32 0.0, %v1503
    %v1505 = vpop.f32.mrb[0].mxu0
    %1506 = vdwg.mxu0
    %v1507 = vsel %vm632, %v1504, -inf
    %1508 = vmax.xlane.f32.xlu0 %v1507
    %v1509 = vpop.xlane.xlu0 %1508
    %v1510 = vsub.f32 %v1504, %v1509
    %v1511 = vmul.f32 %v1510, 1.442695
    %v1512 = vpow.pop %v1511
    %v1513 = vsel %vm632, %v1512, 0.0
    %1514 = vadd.xlane.f32.xlu0 %v1513
    %v1515 = vpop.xlane.xlu0 %1514
    %v1516 = vrcp.pop %v1515
    %v1517 = vmul.f32 %v1512, %v1516
    %v1518 = vadd.f32 %v1517, 0.0
    %1519 = vrot.lane.b32.xlu0 %v1085, 96
    %v1520 = vpop.permute.xlu0 %1519
    %v1523 = vsel %vm632, %v1517, 0
    %1525 = vmatprep.subr.mxu0 0.0
    %1526 = vmatpush1.msra.mxu0 %v1520
    %1527 = vmatprep.subr.mxu0 0.0
    %1528 = vmatpush1.msra.mxu0 0.0
    %1529 = vmatprep.subr.mxu0 0.0
    %1530 = vmatpush1.msra.mxu0 0.0
    %1531 = vmatprep.subr.mxu0 0.0
    %1532 = vmatpush1.msra.mxu0 0.0
    %1533 = vmatprep.subr.mxu0 0.0
    %1534 = vmatpush1.msra.mxu0 0.0
    %1535 = vmatprep.subr.mxu0 0.0
    %1536 = vmatpush1.msra.mxu0 0.0
    %1537 = vmatprep.subr.mxu0 0.0
    %1538 = vmatpush1.msra.mxu0 0.0
    %1539 = vmatprep.subr.mxu0 0.0
    %1540 = vmatpush1.msra.mxu0 0.0
    %1541 = vmatprep.subr.mxu0 0.0
    %1542 = vmatpush1.msra.mxu0 0.0
    %1543 = vmatprep.subr.mxu0 0.0
    %1544 = vmatpush1.msra.mxu0 0.0
    %1545 = vmatprep.subr.mxu0 0.0
    %1546 = vmatpush1.msra.mxu0 0.0
    %1547 = vmatprep.subr.mxu0 0.0
    %1548 = vmatpush1.msra.mxu0 0.0
    %1549 = vmatprep.subr.mxu0 0.0
    %1550 = vmatpush1.msra.mxu0 0.0
    %1551 = vmatprep.subr.mxu0 0.0
    %1552 = vmatpush1.msra.mxu0 0.0
    %1553 = vmatprep.subr.mxu0 0.0
    %1554 = vmatpush1.msra.mxu0 0.0
    %1555 = vmatprep.subr.mxu0 0.0
    %1556 = vmatpush1.msra.mxu0 0.0
    %1557 = vmatprep.subr.mxu0 0.0
    %1558 = vmatpush1.msra.mxu0 0.0
    %1559 = vmatprep.subr.mxu0 0.0
    %1560 = vmatpush1.msra.mxu0 0.0
    %1561 = vmatprep.subr.mxu0 0.0
    %1562 = vmatpush1.msra.mxu0 0.0
    %1563 = vmatprep.subr.mxu0 0.0
    %1564 = vmatpush1.msra.mxu0 0.0
    %1565 = vmatprep.subr.mxu0 0.0
    %1566 = vmatpush1.msra.mxu0 0.0
    %1567 = vmatprep.subr.mxu0 0.0
    %1568 = vmatpush1.msra.mxu0 0.0
    %1569 = vmatprep.subr.mxu0 0.0
    %1570 = vmatpush1.msra.mxu0 0.0
    %1571 = vmatprep.subr.mxu0 0.0
    %1572 = vmatpush1.msra.mxu0 0.0
    %1573 = vmatprep.subr.mxu0 0.0
    %1574 = vmatpush1.msra.mxu0 0.0
    %1575 = vmatprep.subr.mxu0 0.0
    %1576 = vmatpush1.msra.mxu0 0.0
    %1577 = vmatprep.subr.mxu0 0.0
    %1578 = vmatpush1.msra.mxu0 0.0
    %1579 = vmatprep.subr.mxu0 0.0
    %1580 = vmatpush1.msra.mxu0 0.0
    %1581 = vmatprep.subr.mxu0 0.0
    %1582 = vmatpush1.msra.mxu0 0.0
    %1583 = vmatprep.subr.mxu0 0.0
    %1584 = vmatpush1.msra.mxu0 0.0
    %1585 = vmatprep.subr.mxu0 0.0
    %1586 = vmatpush1.msra.mxu0 0.0
    %1587 = vmatprep.subr.mxu0 0.0
    %1588 = vmatpush1.msra.mxu0 0.0
    %1589 = vmatprep.mubr.f32.mxu0 0.0
    %1590 = vmatmul.mubr.f32.gmra.mrb[0].mxu0 %v1523
    %v1591 = vpop.f32.mrb[0].mxu0
    %v1592 = vadd.f32 0.0, %v1591
    %v1593 = vpop.f32.mrb[0].mxu0
    %1594 = vdwg.mxu0
    %1595 = vrot.lane.b32.xlu0 %v1089, 16
    %v1596 = vpop.permute.xlu0 %1595
    %1597 = vrot.lane.b32.xlu0 %v1085, 112
    %v1598 = vpop.permute.xlu0 %1597
    %v1599 = vsel %vm206, %v1596, 0
    %v1601 = vsel %vm206, %v1598, 0
    %1603 = vmatprep.subr.mxu0 0.0
    %1604 = vmatpush1.xpose.msra.mxu0 %v1601
    %1605 = vmatprep.subr.mxu0 0.0
    %1606 = vmatpush1.xpose.msra.mxu0 0.0
    %1607 = vmatprep.subr.mxu0 0.0
    %1608 = vmatpush1.xpose.msra.mxu0 0.0
    %1609 = vmatprep.subr.mxu0 0.0
    %1610 = vmatpush1.xpose.msra.mxu0 0.0
    %1611 = vmatprep.subr.mxu0 0.0
    %1612 = vmatpush1.xpose.msra.mxu0 0.0
    %1613 = vmatprep.subr.mxu0 0.0
    %1614 = vmatpush1.xpose.msra.mxu0 0.0
    %1615 = vmatprep.subr.mxu0 0.0
    %1616 = vmatpush1.xpose.msra.mxu0 0.0
    %1617 = vmatprep.subr.mxu0 0.0
    %1618 = vmatpush1.xpose.msra.mxu0 0.0
    %1619 = vmatprep.subr.mxu0 0.0
    %1620 = vmatpush1.xpose.msra.mxu0 0.0
    %1621 = vmatprep.subr.mxu0 0.0
    %1622 = vmatpush1.xpose.msra.mxu0 0.0
    %1623 = vmatprep.subr.mxu0 0.0
    %1624 = vmatpush1.xpose.msra.mxu0 0.0
    %1625 = vmatprep.subr.mxu0 0.0
    %1626 = vmatpush1.xpose.msra.mxu0 0.0
    %1627 = vmatprep.subr.mxu0 0.0
    %1628 = vmatpush1.xpose.msra.mxu0 0.0
    %1629 = vmatprep.subr.mxu0 0.0
    %1630 = vmatpush1.xpose.msra.mxu0 0.0
    %1631 = vmatprep.subr.mxu0 0.0
    %1632 = vmatpush1.xpose.msra.mxu0 0.0
    %1633 = vmatprep.subr.mxu0 0.0
    %1634 = vmatpush1.xpose.msra.mxu0 0.0
    %1635 = vmatprep.subr.mxu0 0.0
    %1636 = vmatpush1.xpose.msra.mxu0 0.0
    %1637 = vmatprep.subr.mxu0 0.0
    %1638 = vmatpush1.xpose.msra.mxu0 0.0
    %1639 = vmatprep.subr.mxu0 0.0
    %1640 = vmatpush1.xpose.msra.mxu0 0.0
    %1641 = vmatprep.subr.mxu0 0.0
    %1642 = vmatpush1.xpose.msra.mxu0 0.0
    %1643 = vmatprep.subr.mxu0 0.0
    %1644 = vmatpush1.xpose.msra.mxu0 0.0
    %1645 = vmatprep.subr.mxu0 0.0
    %1646 = vmatpush1.xpose.msra.mxu0 0.0
    %1647 = vmatprep.subr.mxu0 0.0
    %1648 = vmatpush1.xpose.msra.mxu0 0.0
    %1649 = vmatprep.subr.mxu0 0.0
    %1650 = vmatpush1.xpose.msra.mxu0 0.0
    %1651 = vmatprep.subr.mxu0 0.0
    %1652 = vmatpush1.xpose.msra.mxu0 0.0
    %1653 = vmatprep.subr.mxu0 0.0
    %1654 = vmatpush1.xpose.msra.mxu0 0.0
    %1655 = vmatprep.subr.mxu0 0.0
    %1656 = vmatpush1.xpose.msra.mxu0 0.0
    %1657 = vmatprep.subr.mxu0 0.0
    %1658 = vmatpush1.xpose.msra.mxu0 0.0
    %1659 = vmatprep.subr.mxu0 0.0
    %1660 = vmatpush1.xpose.msra.mxu0 0.0
    %1661 = vmatprep.subr.mxu0 0.0
    %1662 = vmatpush1.xpose.msra.mxu0 0.0
    %1663 = vmatprep.subr.mxu0 0.0
    %1664 = vmatpush1.xpose.msra.mxu0 0.0
    %1665 = vmatprep.subr.mxu0 0.0
    %1666 = vmatpush1.xpose.msra.mxu0 0.0
    %1667 = vmatprep.mubr.f32.mxu0 0.0
    %1668 = vmatmul.mubr.f32.gmra.mrb[0].mxu0 %v1599
    %v1669 = vpop.f32.mrb[0].mxu0
    %v1670 = vadd.f32 0.0, %v1669
    %v1671 = vpop.f32.mrb[0].mxu0
    %1672 = vdwg.mxu0
    %v1673 = vsel %vm632, %v1670, -inf
    %1674 = vmax.xlane.f32.xlu0 %v1673
    %v1675 = vpop.xlane.xlu0 %1674
    %v1676 = vsub.f32 %v1670, %v1675
    %v1677 = vmul.f32 %v1676, 1.442695
    %v1678 = vpow.pop %v1677
    %v1679 = vsel %vm632, %v1678, 0.0
    %1680 = vadd.xlane.f32.xlu0 %v1679
    %v1681 = vpop.xlane.xlu0 %1680
    %v1682 = vrcp.pop %v1681
    %v1683 = vmul.f32 %v1678, %v1682
    %v1684 = vadd.f32 %v1518, %v1683
    %1685 = vrot.lane.b32.xlu0 %v1085, 80
    %v1686 = vpop.permute.xlu0 %1685
    %v1689 = vsel %vm632, %v1683, 0
    %1691 = vmatprep.subr.mxu0 0.0
    %1692 = vmatpush1.msra.mxu0 %v1686
    %1693 = vmatprep.subr.mxu0 0.0
    %1694 = vmatpush1.msra.mxu0 0.0
    %1695 = vmatprep.subr.mxu0 0.0
    %1696 = vmatpush1.msra.mxu0 0.0
    %1697 = vmatprep.subr.mxu0 0.0
    %1698 = vmatpush1.msra.mxu0 0.0
    %1699 = vmatprep.subr.mxu0 0.0
    %1700 = vmatpush1.msra.mxu0 0.0
    %1701 = vmatprep.subr.mxu0 0.0
    %1702 = vmatpush1.msra.mxu0 0.0
    %1703 = vmatprep.subr.mxu0 0.0
    %1704 = vmatpush1.msra.mxu0 0.0
    %1705 = vmatprep.subr.mxu0 0.0
    %1706 = vmatpush1.msra.mxu0 0.0
    %1707 = vmatprep.subr.mxu0 0.0
    %1708 = vmatpush1.msra.mxu0 0.0
    %1709 = vmatprep.subr.mxu0 0.0
    %1710 = vmatpush1.msra.mxu0 0.0
    %1711 = vmatprep.subr.mxu0 0.0
    %1712 = vmatpush1.msra.mxu0 0.0
    %1713 = vmatprep.subr.mxu0 0.0
    %1714 = vmatpush1.msra.mxu0 0.0
    %1715 = vmatprep.subr.mxu0 0.0
    %1716 = vmatpush1.msra.mxu0 0.0
    %1717 = vmatprep.subr.mxu0 0.0
    %1718 = vmatpush1.msra.mxu0 0.0
    %1719 = vmatprep.subr.mxu0 0.0
    %1720 = vmatpush1.msra.mxu0 0.0
    %1721 = vmatprep.subr.mxu0 0.0
    %1722 = vmatpush1.msra.mxu0 0.0
    %1723 = vmatprep.subr.mxu0 0.0
    %1724 = vmatpush1.msra.mxu0 0.0
    %1725 = vmatprep.subr.mxu0 0.0
    %1726 = vmatpush1.msra.mxu0 0.0
    %1727 = vmatprep.subr.mxu0 0.0
    %1728 = vmatpush1.msra.mxu0 0.0
    %1729 = vmatprep.subr.mxu0 0.0
    %1730 = vmatpush1.msra.mxu0 0.0
    %1731 = vmatprep.subr.mxu0 0.0
    %1732 = vmatpush1.msra.mxu0 0.0
    %1733 = vmatprep.subr.mxu0 0.0
    %1734 = vmatpush1.msra.mxu0 0.0
    %1735 = vmatprep.subr.mxu0 0.0
    %1736 = vmatpush1.msra.mxu0 0.0
    %1737 = vmatprep.subr.mxu0 0.0
    %1738 = vmatpush1.msra.mxu0 0.0
    %1739 = vmatprep.subr.mxu0 0.0
    %1740 = vmatpush1.msra.mxu0 0.0
    %1741 = vmatprep.subr.mxu0 0.0
    %1742 = vmatpush1.msra.mxu0 0.0
    %1743 = vmatprep.subr.mxu0 0.0
    %1744 = vmatpush1.msra.mxu0 0.0
    %1745 = vmatprep.subr.mxu0 0.0
    %1746 = vmatpush1.msra.mxu0 0.0
    %1747 = vmatprep.subr.mxu0 0.0
    %1748 = vmatpush1.msra.mxu0 0.0
    %1749 = vmatprep.subr.mxu0 0.0
    %1750 = vmatpush1.msra.mxu0 0.0
    %1751 = vmatprep.subr.mxu0 0.0
    %1752 = vmatpush1.msra.mxu0 0.0
    %1753 = vmatprep.subr.mxu0 0.0
    %1754 = vmatpush1.msra.mxu0 0.0
    %1755 = vmatprep.mubr.f32.mxu0 0.0
    %1756 = vmatmul.mubr.f32.gmra.mrb[0].mxu0 %v1689
    %v1757 = vpop.f32.mrb[0].mxu0
    %v1758 = vadd.f32 0.0, %v1757
    %v1759 = vpop.f32.mrb[0].mxu0
    %1760 = vdwg.mxu0
    %1762 = vrot.lane.b32.xlu0 %v1758, 16
    %v1763 = vpop.permute.xlu0 %1762
    %v1765 = vsel %vm206, %v1592, %v1763
    %v1766 = vmul.f32 %v1684, 0.5
    %1768 = vrot.lane.b32.xlu0 %v1765, 32
    %v1769 = vpop.permute.xlu0 %1768
    %v1771 = vsel %vm101, %v1428, %v1769
    %s1772 = scalar_lea.vmem [#allocation8], 64
    %v1773 = vld [vmem:[%s1772] sm:$0xff]
    %v1774 = vld [vmem:[%s1772 + $0x8] sm:$0xff]
    %v1775 = vld [vmem:[%s1772 + $0x10] sm:$0xff]
    %v1776 = vld [vmem:[%s1772 + $0x18] sm:$0xff]
    %v1777 = vld [vmem:[%s1772 + $0x20] sm:$0xff]
    %v1778 = vld [vmem:[%s1772 + $0x28] sm:$0xff]
    %v1779 = vld [vmem:[%s1772 + $0x30] sm:$0xff]
    %v1780 = vld [vmem:[%s1772 + $0x38] sm:$0xff]
    %s1781 = scalar_lea.vmem %s5, 1
    %v1782 = vld [vmem:[%s1781] sm:$0x1]
    %v1784 = vlaneseq
    %v1785 = vshrl.u32 %v1784, 7
    %v1786 = vsub.s32 0, %v1785
    %v1787 = vrot.slane %v1782, %v1786
    %v1790 = vsel %vm913, %v1771, 0
    %1792 = vmatprep.subr.mxu0 0.0
    %1793 = vmatpush1.msra.mxu0 %v1773
    %1794 = vmatprep.subr.mxu0 0.0
    %1795 = vmatpush1.msra.mxu0 %v1774
    %1796 = vmatprep.subr.mxu0 0.0
    %1797 = vmatpush1.msra.mxu0 %v1775
    %1798 = vmatprep.subr.mxu0 0.0
    %1799 = vmatpush1.msra.mxu0 %v1776
    %1800 = vmatprep.subr.mxu0 0.0
    %1801 = vmatpush1.msra.mxu0 %v1777
    %1802 = vmatprep.subr.mxu0 0.0
    %1803 = vmatpush1.msra.mxu0 %v1778
    %1804 = vmatprep.subr.mxu0 0.0
    %1805 = vmatpush1.msra.mxu0 %v1779
    %1806 = vmatprep.subr.mxu0 0.0
    %1807 = vmatpush1.msra.mxu0 %v1780
    %1808 = vmatprep.subr.mxu0 0.0
    %1809 = vmatpush1.msra.mxu0 0.0
    %1810 = vmatprep.subr.mxu0 0.0
    %1811 = vmatpush1.msra.mxu0 0.0
    %1812 = vmatprep.subr.mxu0 0.0
    %1813 = vmatpush1.msra.mxu0 0.0
    %1814 = vmatprep.subr.mxu0 0.0
    %1815 = vmatpush1.msra.mxu0 0.0
    %1816 = vmatprep.subr.mxu0 0.0
    %1817 = vmatpush1.msra.mxu0 0.0
    %1818 = vmatprep.subr.mxu0 0.0
    %1819 = vmatpush1.msra.mxu0 0.0
    %1820 = vmatprep.subr.mxu0 0.0
    %1821 = vmatpush1.msra.mxu0 0.0
    %1822 = vmatprep.subr.mxu0 0.0
    %1823 = vmatpush1.msra.mxu0 0.0
    %1824 = vmatprep.subr.mxu0 0.0
    %1825 = vmatpush1.msra.mxu0 0.0
    %1826 = vmatprep.subr.mxu0 0.0
    %1827 = vmatpush1.msra.mxu0 0.0
    %1828 = vmatprep.subr.mxu0 0.0
    %1829 = vmatpush1.msra.mxu0 0.0
    %1830 = vmatprep.subr.mxu0 0.0
    %1831 = vmatpush1.msra.mxu0 0.0
    %1832 = vmatprep.subr.mxu0 0.0
    %1833 = vmatpush1.msra.mxu0 0.0
    %1834 = vmatprep.subr.mxu0 0.0
    %1835 = vmatpush1.msra.mxu0 0.0
    %1836 = vmatprep.subr.mxu0 0.0
    %1837 = vmatpush1.msra.mxu0 0.0
    %1838 = vmatprep.subr.mxu0 0.0
    %1839 = vmatpush1.msra.mxu0 0.0
    %1840 = vmatprep.subr.mxu0 0.0
    %1841 = vmatpush1.msra.mxu0 0.0
    %1842 = vmatprep.subr.mxu0 0.0
    %1843 = vmatpush1.msra.mxu0 0.0
    %1844 = vmatprep.subr.mxu0 0.0
    %1845 = vmatpush1.msra.mxu0 0.0
    %1846 = vmatprep.subr.mxu0 0.0
    %1847 = vmatpush1.msra.mxu0 0.0
    %1848 = vmatprep.subr.mxu0 0.0
    %1849 = vmatpush1.msra.mxu0 0.0
    %1850 = vmatprep.subr.mxu0 0.0
    %1851 = vmatpush1.msra.mxu0 0.0
    %1852 = vmatprep.subr.mxu0 0.0
    %1853 = vmatpush1.msra.mxu0 0.0
    %1854 = vmatprep.subr.mxu0 0.0
    %1855 = vmatpush1.msra.mxu0 0.0
    %1856 = vmatprep.mubr.f32.mxu0 0.0
    %1857 = vmatmul.mubr.f32.gmra.mrb[0].mxu0 %v1790
    %v1858 = vpop.f32.mrb[0].mxu0
    %v1859 = vadd.f32 %v1787, %v1858
    %v1860 = vpop.f32.mrb[0].mxu0
    %1861 = vdwg.mxu0
    %1863 = vrot.lane.b32.xlu0 %v1859, 64
    %v1864 = vpop.permute.xlu0 %1863
    %1867 = vrot.lane.b32.xlu0 %v892, 16
    %v1868 = vpop.permute.xlu0 %1867
    %1871 = vrot.lane.b32.xlu0 %v1429, 24
    %v1872 = vpop.permute.xlu0 %1871
    %1875 = vrot.lane.b32.xlu0 %v1766, 32
    %v1876 = vpop.permute.xlu0 %1875
    %v1878 = vsel %vm913, %v984, %v1864
    %v1879 = vsel %vm206, %v553, %v1868
    %vm1880 = vcmask 195584
    %v1881 = vsel %vm1880, %v1879, %v1872
    %v1882 = vsel %vm101, %v1881, %v1876
    %vm1883 = vcmask 326656
    %v1884 = vsel %vm1883, %v1882, 0.0
    %1885 = vst [vmem:[#allocation10] sm:$0xff] %v1878
    %1886 = vst [vmem:[#allocation10 + $0x8] sm:$0xff] %v1884
    // Predicated region
    $region42: #{tpu_custom_call.1} parent=1 // pred_check
      _
    $region43: #{tpu_custom_call.1} parent=1 // pred_check_branch
      %1888 = sbr.rel (0) target = $region45
    $region44: #{tpu_custom_call.1} parent=1 // pred_region
      %s1890 = ssub.s32 256, 256
      %1891 = vsyncadd [#allocation4], %s1890
      %s1893 = sshll.u32 [#allocation10], 4
      %s1894 = int_to_ptr.vmem [resolvable:$true] %s1893
      %1896 = dma.vmem_to_hbm [thread:$0]  %s1894, 256, %s6, [#allocation4]
    $region45: #{tpu_custom_call.1} parent=1 // pred_fallthru
      _
    // Predicated region
    $region46: #{tpu_custom_call.1} parent=1 // pred_check
      _
    $region47: #{tpu_custom_call.1} parent=1 // pred_check_branch
      %1898 = sbr.rel (0) target = $region49
    $region48: #{tpu_custom_call.1} parent=1 // pred_region
      %1899 = dma.done [#allocation4], 256
    $region49: #{tpu_custom_call.1} parent=1 // pred_fallthru
      _
    %1900 = vsyncpa [#allocation3], 1
    %1901 = vsyncpa [#allocation6], 1
    %1902 = vsyncpa [#allocation9], 1
    %1903 = vsyncpa [#allocation4], 1

</llo_original>
